<compile_context>
chip_gen: v7x
topology: tpu7x:2x2x1
jax: 0.10.0
libtpu: 0.0.40
codegen_flags: <defaults>
</compile_context>

<pallas_src>
import functools

import jax
import jax.numpy as jnp
from jax.experimental import pallas as pl
from jax.experimental.pallas import tpu as pltpu


# ------------------------------ fused kernel ---------------------------------

def _mdafn_fused_kernel(
    x_ref,                              # (6, T) f32: rows 0:3 = vis, 3:6 = ir
    bbw_ref, bbb_ref,                   # backbone 1x1: (Cb, 3) f32, (Cb, 1) f32
    encw_ref, encb_ref,                 # encoder 1x1:  (Ce, Cb) mxu-dtype, (Ce, 1) f32
    decw_ref, decb_ref,                 # decoder head: (Ch, Ce) mxu-dtype, (Ch, 1) f32
    pred_ref,                           # (Ch, T) f32
    attn_ref,                           # (2, T) f32: row 0 = vis attn, row 1 = ir attn
    pooled_ref=None,                    # (8, Ce) f32 per-tile pooled partial (training only)
    *, tile, hw, masked, with_emd):
    x = x_ref[...]
    bbw = bbw_ref[...]
    bbb = bbb_ref[...]
    mxu_dtype = encw_ref.dtype

    def backbone(base):
        # 3-input-channel 1x1 conv as VPU broadcast-MACs (a K=3 MXU matmul
        # would waste >97% of the MXU rows); -> (Cb, T) f32
        y = (bbw[:, 0:1] * x[base + 0:base + 1, :]
             + bbw[:, 1:2] * x[base + 1:base + 2, :]
             + bbw[:, 2:3] * x[base + 2:base + 3, :])
        return jnp.maximum(y + bbb, 0.0)

    vis_bb = backbone(0)
    ir_bb = backbone(3)

    # attention = sigmoid(channel-mean of the last backbone level); both rows
    # go into ONE (2, T) output block -> a single DMA write-back per step.
    attn_ref[0:1, :] = jax.nn.sigmoid(
        jnp.mean(vis_bb, axis=0, keepdims=True)).astype(attn_ref.dtype)
    attn_ref[1:2, :] = jax.nn.sigmoid(
        jnp.mean(ir_bb, axis=0, keepdims=True)).astype(attn_ref.dtype)

    encw = encw_ref[...]
    encb = encb_ref[...]

    def encoder(f):
        # bf16 operands, f32 accumulation (MXU pushes are the binding slot).
        # NOTE (v5e roofline): K = Cb = 32 uses only 25% of the 128-wide MXU
        # (12.5% of the 256-wide MXU on v6e/v7x); that is a model-shape limit.
        y = jnp.dot(encw, f.astype(mxu_dtype),
                    preferred_element_type=jnp.float32) + encb
        return jnp.maximum(y, 0.0)

    vis_enc = encoder(vis_bb)           # (Ce, T) f32 -- never leaves VMEM
    ir_enc = encoder(ir_bb)

    # decoder: 'add' fusion + 1x1 head; lane-dense (Ch, T) store
    fused = vis_enc + ir_enc
    pred = jnp.dot(decw_ref[...], fused.astype(mxu_dtype),
                   preferred_element_type=jnp.float32) + decb_ref[...]
    pred_ref[...] = pred.astype(pred_ref.dtype)

    if with_emd:
        # adaptive_avg_pool2d((1,1)) of the vis encoder feature, emitted as a
        # per-tile pooled partial sum (XLU lane-reduce only, no MXU work); the
        # (2, Ce) Linear + softmax is finished in the wrapper, so nothing is
        # resident across the spatial grid axis and it stays "parallel".
        pool_src = vis_enc
        if masked:
            col = (jax.lax.broadcasted_iota(jnp.int32, (1, tile), 1)
                   + pl.program_id(1) * tile)
            pool_src = jnp.where(col < hw, pool_src, 0.0)
        part = jnp.sum(pool_src, axis=1, keepdims=True)        # (Ce, 1)
        # lane-dense store: put Ce on lanes and broadcast across 8 sublanes so
        # the output block keeps an (8, 128)-friendly shape.
        pooled_ref[...] = jnp.broadcast_to(part.T, pooled_ref.shape)


# ------------------------------ wrapper ---------------------------------------

def _plan_spatial(hw, max_tile):
    """Returns (tile, padded_hw, masked).

    tile is lane-dense (multiple of 128) unless the whole spatial extent fits
    in one block; ragged H*W is padded to a tile multiple and masked.
    """
    if hw <= max_tile:
        return hw, hw, False
    cap = max(128, (max_tile // 128) * 128)
    t = cap
    while t >= 128:
        if hw % t == 0:
            return t, hw, False
        t -= 128
    hw_pad = pl.cdiv(hw, cap) * cap
    return cap, hw_pad, True


def multimodal_mdafn_forward(params, x, training=True, max_tile=4096,
                             mxu_dtype=jnp.bfloat16,
                             vmem_limit_bytes=48 * 1024 * 1024):
    """x: (B, 6, H, W) NCHW; channels 0:3 = vis, 3:6 = ir."""
    B, C6, H, W = x.shape
    assert C6 == 6, "multimodal path requires 6 input channels"
    hw = H * W
    # TODO(synk): per-generation tile auto-tuning (v6e can take T=8192 with a
    # ~64 MiB vmem limit; v7x has only 64 MiB physical VMEM so keep headroom).
    tile, hw_pad, masked = _plan_spatial(hw, max_tile)
    n_s = hw_pad // tile

    # channel-first with spatial flattened into lanes: free bitcast, no copies
    xf = x.reshape(B, 6, hw)
    if hw_pad != hw:
        xf = jnp.pad(xf, ((0, 0), (0, 0), (0, hw_pad - hw)))

    cb = params["backbone_w"].shape[0]
    ce = params["encoder_w"].shape[0]
    ch = params["decoder_w"].shape[0]

    # MXU operands in bf16 (f32 accumulation inside the kernel)
    encw = params["encoder_w"].astype(mxu_dtype)
    decw = params["decoder_w"].astype(mxu_dtype)

    def xmap(b, s):          # per-(batch, spatial-tile) blocks
        return (b, 0, s)

    def wmap(b, s):          # whole-array weights, fetched once
        return (0, 0)

    out_shape = [
        jax.ShapeDtypeStruct((B, ch, hw_pad), jnp.float32),    # pred
        jax.ShapeDtypeStruct((B, 2, hw_pad), jnp.float32),     # vis+ir attention
    ]
    out_specs = [
        pl.BlockSpec((None, ch, tile), xmap),
        pl.BlockSpec((None, 2, tile), xmap),
    ]
    if training:
        # per-tile pooled partial sums: lane-dense (8, Ce) blocks, row 0 used
        out_shape.append(jax.ShapeDtypeStruct((B, 8 * n_s, ce), jnp.float32))
        out_specs.append(pl.BlockSpec((None, 8, ce), lambda b, s: (b, s, 0)))

    flops = B * hw_pad * (2 * (2 * 3 * cb) + 2 * (2 * cb * ce) + 2 * ce * ch)
    bytes_io = 4 * (xf.size + B * (ch + 2) * hw_pad)
    if training:
        bytes_io += 4 * B * 8 * n_s * ce
    cost = pl.CostEstimate(flops=int(flops),
                           transcendentals=int(2 * B * hw_pad),
                           bytes_accessed=int(bytes_io))

    kernel = functools.partial(_mdafn_fused_kernel, tile=tile, hw=hw,
                               masked=masked, with_emd=training)

    outs = pl.pallas_call(
        kernel,
        out_shape=tuple(out_shape),
        grid=(B, n_s),
        in_specs=[
            pl.BlockSpec((None, 6, tile), xmap),               # x (vis+ir)
            pl.BlockSpec((cb, 3), wmap),                       # backbone_w
            pl.BlockSpec((cb, 1), wmap),                       # backbone_b
            pl.BlockSpec((ce, cb), wmap),                      # encoder_w (bf16)
            pl.BlockSpec((ce, 1), wmap),                       # encoder_b
            pl.BlockSpec((ch, ce), wmap),                      # decoder_w (bf16)
            pl.BlockSpec((ch, 1), wmap),                       # decoder_b
        ],
        out_specs=tuple(out_specs),
        compiler_params=pltpu.CompilerParams(
            dimension_semantics=("parallel", "parallel"),
            vmem_limit_bytes=vmem_limit_bytes),
        cost_estimate=cost,
    )(xf,
      params["backbone_w"], params["backbone_b"],
      encw, params["encoder_b"],
      decw, params["decoder_b"])

    if training:
        pred_p, attn_p, pooled_p = outs
    else:
        pred_p, attn_p = outs

    pred = pred_p[:, :, :hw].reshape(B, ch, H, W)              # NCHW, no transpose
    attn = attn_p[:, :, :hw]
    out = {
        "pred": pred,
        "vis_attention": attn[:, 0, :].reshape(B, H, W),
        "ir_attention": attn[:, 1, :].reshape(B, H, W),
    }
    if training:
        pooled = pooled_p.reshape(B, n_s, 8, ce)[:, :, 0, :].sum(axis=1) / float(hw)
        logits = pooled @ params["emd_w"].T + params["emd_b"]   # (B, 2), tiny
        out["emd_weights"] = jax.nn.softmax(logits, axis=-1)
    return out


# ------------------------------ params / reference ----------------------------

def init_params(key, c_backbone=32, c_encoder=256, c_head=8):
    k1, k2, k3, k4 = jax.random.split(key, 4)
    return {
        # synthetic injected modules; weights stored channel-first (out, in)
        "backbone_w": 0.5 * jax.random.normal(k1, (c_backbone, 3), jnp.float32),
        "backbone_b": jnp.zeros((c_backbone, 1), jnp.float32),
        "encoder_w": 0.2 * jax.random.normal(k2, (c_encoder, c_backbone), jnp.float32),
        "encoder_b": jnp.zeros((c_encoder, 1), jnp.float32),
        "decoder_w": 0.1 * jax.random.normal(k3, (c_head, c_encoder), jnp.float32),
        "decoder_b": jnp.zeros((c_head, 1), jnp.float32),
        # exact init from the module: weight ~ N(0, 0.01), bias = 0.5
        "emd_w": 0.01 * jax.random.normal(k4, (2, c_encoder), jnp.float32),
        "emd_b": jnp.full((2,), 0.5, jnp.float32),
    }


def reference_forward(params, x, training=True, mxu_dtype=jnp.bfloat16):
    """Pure-JAX reference with identical semantics (incl. bf16 MXU operands)."""
    B, _, H, W = x.shape
    hw = H * W
    hp = jax.lax.Precision.HIGHEST
    f32 = jnp.float32
    vis = x[:, 0:3].reshape(B, 3, hw)
    ir = x[:, 3:6].reshape(B, 3, hw)

    def conv(w, b, t, dt):
        return jnp.einsum("oc,bct->bot", w.astype(dt), t.astype(dt),
                          precision=hp, preferred_element_type=f32) + b

    vis_bb = jnp.maximum(conv(params["backbone_w"], params["backbone_b"], vis, f32), 0.0)
    ir_bb = jnp.maximum(conv(params["backbone_w"], params["backbone_b"], ir, f32), 0.0)
    vis_attn = jax.nn.sigmoid(vis_bb.mean(axis=1)).reshape(B, H, W)
    ir_attn = jax.nn.sigmoid(ir_bb.mean(axis=1)).reshape(B, H, W)
    vis_enc = jnp.maximum(conv(params["encoder_w"], params["encoder_b"], vis_bb, mxu_dtype), 0.0)
    ir_enc = jnp.maximum(conv(params["encoder_w"], params["encoder_b"], ir_bb, mxu_dtype), 0.0)
    pred = conv(params["decoder_w"], params["decoder_b"], vis_enc + ir_enc, mxu_dtype)
    out = {
        "pred": pred.reshape(B, -1, H, W),
        "vis_attention": vis_attn,
        "ir_attention": ir_attn,
    }
    if training:
        pooled = vis_enc.mean(axis=2)                                    # (B, Ce)
        logits = pooled @ params["emd_w"].T + params["emd_b"]
        out["emd_weights"] = jax.nn.softmax(logits, axis=-1)
    return out


# ------------------------------ main ------------------------------------------

if __name__ == "__main__":
    key = jax.random.PRNGKey(0)
    pkey, xkey, xkey2 = jax.random.split(key, 3)
    params = init_params(pkey)

    # --- test 1: training forward, single spatial tile -----------------------
    B, H, W = 2, 16, 16
    x = jax.random.normal(xkey, (B, 6, H, W), jnp.float32)   # NCHW, 6 = vis(3)+ir(3)

    fwd = jax.jit(functools.partial(multimodal_mdafn_forward, training=True))
    out = fwd(params, x)
    jax.block_until_ready(out)

    assert out["pred"].shape == (B, 8, H, W)
    assert out["vis_attention"].shape == (B, H, W)
    assert out["ir_attention"].shape == (B, H, W)
    assert out["emd_weights"].shape == (B, 2)
    assert jnp.allclose(jnp.sum(out["emd_weights"], axis=1), 1.0, atol=1e-5)

    ref = reference_forward(params, x, training=True)
    for k in ("pred", "vis_attention", "ir_attention", "emd_weights"):
        assert jnp.allclose(out[k], ref[k], atol=2e-3, rtol=2e-3), f"mismatch in {k}"

    # --- test 2: inference forward (EMD path compiled out) -------------------
    fwd_eval = jax.jit(functools.partial(multimodal_mdafn_forward, training=False))
    out_eval = fwd_eval(params, x)
    jax.block_until_ready(out_eval)
    assert "emd_weights" not in out_eval
    assert jnp.allclose(out_eval["pred"], ref["pred"], atol=2e-3, rtol=2e-3)

    # --- test 3: multi-tile + ragged (padded/masked) spatial path ------------
    B3, H3, W3 = 1, 6, 54            # H*W = 324 -> padded to 384 = 3 tiles of 128
    x3 = jax.random.normal(xkey2, (B3, 6, H3, W3), jnp.float32)
    fwd3 = jax.jit(functools.partial(multimodal_mdafn_forward, training=True,
                                     max_tile=128))
    out3 = fwd3(params, x3)
    jax.block_until_ready(out3)
    ref3 = reference_forward(params, x3, training=True)
    for k in ("pred", "vis_attention", "ir_attention", "emd_weights"):
        assert jnp.allclose(out3[k], ref3[k], atol=2e-3, rtol=2e-3), f"tiled mismatch in {k}"

    print("KERNEL_OK")
</pallas_src>

<mosaic_0001>
module attributes {stable_mosaic.version = 11 : i64} {
  func.func @_mdafn_fused_kernel(%arg0: i32, %arg1: i32, %arg2: memref<1x6x256xf32, #tpu.memory_space<vmem>>, %arg3: memref<32x3xf32, #tpu.memory_space<vmem>>, %arg4: memref<32x1xf32, #tpu.memory_space<vmem>>, %arg5: memref<256x32xbf16, #tpu.memory_space<vmem>>, %arg6: memref<256x1xf32, #tpu.memory_space<vmem>>, %arg7: memref<8x256xbf16, #tpu.memory_space<vmem>>, %arg8: memref<8x1xf32, #tpu.memory_space<vmem>>, %arg9: memref<1x8x256xf32, #tpu.memory_space<vmem>>, %arg10: memref<1x2x256xf32, #tpu.memory_space<vmem>>, %arg11: memref<1x8x256xf32, #tpu.memory_space<vmem>>) attributes {dimension_semantics = [#tpu.dimension_semantics<parallel>, #tpu.dimension_semantics<parallel>], iteration_bounds = array<i64: 2, 1>, scalar_prefetch = 0 : i64, scratch_operands = 0 : i64, tpu.core_type = #tpu.core_type<tc>, window_params = [{transform_indices = @transform_0, window_bounds = array<i64: 1, 6, 256>}, {pipeline_mode = #tpu.pipeline_mode<synchronous>, transform_indices = @transform_1, window_bounds = array<i64: 32, 3>}, {pipeline_mode = #tpu.pipeline_mode<synchronous>, transform_indices = @transform_2, window_bounds = array<i64: 32, 1>}, {pipeline_mode = #tpu.pipeline_mode<synchronous>, transform_indices = @transform_3, window_bounds = array<i64: 256, 32>}, {pipeline_mode = #tpu.pipeline_mode<synchronous>, transform_indices = @transform_4, window_bounds = array<i64: 256, 1>}, {pipeline_mode = #tpu.pipeline_mode<synchronous>, transform_indices = @transform_5, window_bounds = array<i64: 8, 256>}, {pipeline_mode = #tpu.pipeline_mode<synchronous>, transform_indices = @transform_6, window_bounds = array<i64: 8, 1>}, {transform_indices = @transform_7, window_bounds = array<i64: 1, 8, 256>}, {transform_indices = @transform_8, window_bounds = array<i64: 1, 2, 256>}, {transform_indices = @transform_9, window_bounds = array<i64: 1, 8, 256>}]} {
    %c0 = arith.constant 0 : index
    %c0_0 = arith.constant 0 : index
    %c0_1 = arith.constant 0 : index
    %0 = vector.load %arg2[%c0, %c0_0, %c0_1] : memref<1x6x256xf32, #tpu.memory_space<vmem>>, vector<1x6x256xf32>
    %1 = vector.shape_cast %0 : vector<1x6x256xf32> to vector<6x256xf32>
    %c0_2 = arith.constant 0 : index
    %c0_3 = arith.constant 0 : index
    %2 = vector.load %arg3[%c0_2, %c0_3] : memref<32x3xf32, #tpu.memory_space<vmem>>, vector<32x3xf32>
    %c0_4 = arith.constant 0 : index
    %c0_5 = arith.constant 0 : index
    %3 = vector.load %arg4[%c0_4, %c0_5] : memref<32x1xf32, #tpu.memory_space<vmem>>, vector<32x1xf32>
    %4 = vector.extract_strided_slice %2 {offsets = [0, 0], sizes = [32, 1], strides = [1, 1]} : vector<32x3xf32> to vector<32x1xf32>
    %5 = vector.extract_strided_slice %1 {offsets = [0, 0], sizes = [1, 256], strides = [1, 1]} : vector<6x256xf32> to vector<1x256xf32>
    %6 = vector.broadcast %4 : vector<32x1xf32> to vector<32x256xf32>
    %7 = vector.broadcast %5 : vector<1x256xf32> to vector<32x256xf32>
    %8 = arith.mulf %6, %7 : vector<32x256xf32>
    %9 = vector.extract_strided_slice %2 {offsets = [0, 1], sizes = [32, 1], strides = [1, 1]} : vector<32x3xf32> to vector<32x1xf32>
    %10 = vector.extract_strided_slice %1 {offsets = [1, 0], sizes = [1, 256], strides = [1, 1]} : vector<6x256xf32> to vector<1x256xf32>
    %11 = vector.broadcast %9 : vector<32x1xf32> to vector<32x256xf32>
    %12 = vector.broadcast %10 : vector<1x256xf32> to vector<32x256xf32>
    %13 = arith.mulf %11, %12 : vector<32x256xf32>
    %14 = arith.addf %8, %13 : vector<32x256xf32>
    %15 = vector.extract_strided_slice %2 {offsets = [0, 2], sizes = [32, 1], strides = [1, 1]} : vector<32x3xf32> to vector<32x1xf32>
    %16 = vector.extract_strided_slice %1 {offsets = [2, 0], sizes = [1, 256], strides = [1, 1]} : vector<6x256xf32> to vector<1x256xf32>
    %17 = vector.broadcast %15 : vector<32x1xf32> to vector<32x256xf32>
    %18 = vector.broadcast %16 : vector<1x256xf32> to vector<32x256xf32>
    %19 = arith.mulf %17, %18 : vector<32x256xf32>
    %20 = arith.addf %14, %19 : vector<32x256xf32>
    %21 = vector.broadcast %3 : vector<32x1xf32> to vector<32x256xf32>
    %22 = arith.addf %20, %21 : vector<32x256xf32>
    %cst = arith.constant 0.000000e+00 : f32
    %23 = vector.broadcast %cst : f32 to vector<32x256xf32>
    %24 = arith.maximumf %22, %23 : vector<32x256xf32>
    %25 = vector.extract_strided_slice %2 {offsets = [0, 0], sizes = [32, 1], strides = [1, 1]} : vector<32x3xf32> to vector<32x1xf32>
    %26 = vector.extract_strided_slice %1 {offsets = [3, 0], sizes = [1, 256], strides = [1, 1]} : vector<6x256xf32> to vector<1x256xf32>
    %27 = vector.broadcast %25 : vector<32x1xf32> to vector<32x256xf32>
    %28 = vector.broadcast %26 : vector<1x256xf32> to vector<32x256xf32>
    %29 = arith.mulf %27, %28 : vector<32x256xf32>
    %30 = vector.extract_strided_slice %2 {offsets = [0, 1], sizes = [32, 1], strides = [1, 1]} : vector<32x3xf32> to vector<32x1xf32>
    %31 = vector.extract_strided_slice %1 {offsets = [4, 0], sizes = [1, 256], strides = [1, 1]} : vector<6x256xf32> to vector<1x256xf32>
    %32 = vector.broadcast %30 : vector<32x1xf32> to vector<32x256xf32>
    %33 = vector.broadcast %31 : vector<1x256xf32> to vector<32x256xf32>
    %34 = arith.mulf %32, %33 : vector<32x256xf32>
    %35 = arith.addf %29, %34 : vector<32x256xf32>
    %36 = vector.extract_strided_slice %2 {offsets = [0, 2], sizes = [32, 1], strides = [1, 1]} : vector<32x3xf32> to vector<32x1xf32>
    %37 = vector.extract_strided_slice %1 {offsets = [5, 0], sizes = [1, 256], strides = [1, 1]} : vector<6x256xf32> to vector<1x256xf32>
    %38 = vector.broadcast %36 : vector<32x1xf32> to vector<32x256xf32>
    %39 = vector.broadcast %37 : vector<1x256xf32> to vector<32x256xf32>
    %40 = arith.mulf %38, %39 : vector<32x256xf32>
    %41 = arith.addf %35, %40 : vector<32x256xf32>
    %42 = vector.broadcast %3 : vector<32x1xf32> to vector<32x256xf32>
    %43 = arith.addf %41, %42 : vector<32x256xf32>
    %cst_6 = arith.constant 0.000000e+00 : f32
    %44 = vector.broadcast %cst_6 : f32 to vector<32x256xf32>
    %45 = arith.maximumf %43, %44 : vector<32x256xf32>
    %cst_7 = arith.constant dense<0.000000e+00> : vector<256xf32>
    %46 = vector.multi_reduction <add>, %24, %cst_7 [0] : vector<32x256xf32> to vector<256xf32>
    %47 = vector.shape_cast %46 : vector<256xf32> to vector<1x256xf32>
    %cst_8 = arith.constant 3.200000e+01 : f32
    %48 = vector.broadcast %cst_8 : f32 to vector<1x256xf32>
    %49 = arith.divf %47, %48 : vector<1x256xf32>
    %50 = arith.negf %49 : vector<1x256xf32>
    %51 = math.exp %50 : vector<1x256xf32>
    %cst_9 = arith.constant 1.000000e+00 : f32
    %52 = vector.broadcast %cst_9 : f32 to vector<1x256xf32>
    %53 = arith.addf %52, %51 : vector<1x256xf32>
    %54 = arith.divf %52, %53 : vector<1x256xf32>
    %c0_10 = arith.constant 0 : index
    %c0_11 = arith.constant 0 : index
    %c0_12 = arith.constant 0 : index
    %55 = vector.load %arg10[%c0_10, %c0_11, %c0_12] : memref<1x2x256xf32, #tpu.memory_space<vmem>>, vector<1x1x256xf32>
    %56 = vector.shape_cast %55 : vector<1x1x256xf32> to vector<1x256xf32>
    %57 = vector.shape_cast %54 : vector<1x256xf32> to vector<1x1x256xf32>
    tpu.vector_store %arg10[%c0_10, %c0_11, %c0_12], %57 {strides = array<i32>} : memref<1x2x256xf32, #tpu.memory_space<vmem>>, vector<1x1x256xf32>,
    %cst_13 = arith.constant dense<0.000000e+00> : vector<256xf32>
    %58 = vector.multi_reduction <add>, %45, %cst_13 [0] : vector<32x256xf32> to vector<256xf32>
    %59 = vector.shape_cast %58 : vector<256xf32> to vector<1x256xf32>
    %cst_14 = arith.constant 3.200000e+01 : f32
    %60 = vector.broadcast %cst_14 : f32 to vector<1x256xf32>
    %61 = arith.divf %59, %60 : vector<1x256xf32>
    %62 = arith.negf %61 : vector<1x256xf32>
    %63 = math.exp %62 : vector<1x256xf32>
    %cst_15 = arith.constant 1.000000e+00 : f32
    %64 = vector.broadcast %cst_15 : f32 to vector<1x256xf32>
    %65 = arith.addf %64, %63 : vector<1x256xf32>
    %66 = arith.divf %64, %65 : vector<1x256xf32>
    %c0_16 = arith.constant 0 : index
    %c1 = arith.constant 1 : index
    %c0_17 = arith.constant 0 : index
    %67 = vector.load %arg10[%c0_16, %c1, %c0_17] : memref<1x2x256xf32, #tpu.memory_space<vmem>>, vector<1x1x256xf32>
    %68 = vector.shape_cast %67 : vector<1x1x256xf32> to vector<1x256xf32>
    %69 = vector.shape_cast %66 : vector<1x256xf32> to vector<1x1x256xf32>
    tpu.vector_store %arg10[%c0_16, %c1, %c0_17], %69 {strides = array<i32>} : memref<1x2x256xf32, #tpu.memory_space<vmem>>, vector<1x1x256xf32>,
    %c0_18 = arith.constant 0 : index
    %c0_19 = arith.constant 0 : index
    %70 = vector.load %arg5[%c0_18, %c0_19] : memref<256x32xbf16, #tpu.memory_space<vmem>>, vector<256x32xbf16>
    %c0_20 = arith.constant 0 : index
    %c0_21 = arith.constant 0 : index
    %71 = vector.load %arg6[%c0_20, %c0_21] : memref<256x1xf32, #tpu.memory_space<vmem>>, vector<256x1xf32>
    %72 = arith.truncf %24 : vector<32x256xf32> to vector<32x256xbf16>
    %cst_22 = arith.constant dense<0.000000e+00> : vector<256x256xf32>
    %73 = tpu.matmul %70, %72, %cst_22 {dimension_numbers = #tpu.dot_dimension_numbers<[1], [0], [0], [1], [0, 0, 1, 1], [], []>} : vector<256x32xbf16>, vector<32x256xbf16>, vector<256x256xf32> -> vector<256x256xf32>
    %74 = vector.broadcast %71 : vector<256x1xf32> to vector<256x256xf32>
    %75 = arith.addf %73, %74 : vector<256x256xf32>
    %cst_23 = arith.constant 0.000000e+00 : f32
    %76 = vector.broadcast %cst_23 : f32 to vector<256x256xf32>
    %77 = arith.maximumf %75, %76 : vector<256x256xf32>
    %78 = arith.truncf %45 : vector<32x256xf32> to vector<32x256xbf16>
    %cst_24 = arith.constant dense<0.000000e+00> : vector<256x256xf32>
    %79 = tpu.matmul %70, %78, %cst_24 {dimension_numbers = #tpu.dot_dimension_numbers<[1], [0], [0], [1], [0, 0, 1, 1], [], []>} : vector<256x32xbf16>, vector<32x256xbf16>, vector<256x256xf32> -> vector<256x256xf32>
    %80 = vector.broadcast %71 : vector<256x1xf32> to vector<256x256xf32>
    %81 = arith.addf %79, %80 : vector<256x256xf32>
    %cst_25 = arith.constant 0.000000e+00 : f32
    %82 = vector.broadcast %cst_25 : f32 to vector<256x256xf32>
    %83 = arith.maximumf %81, %82 : vector<256x256xf32>
    %84 = arith.addf %77, %83 : vector<256x256xf32>
    %c0_26 = arith.constant 0 : index
    %c0_27 = arith.constant 0 : index
    %85 = vector.load %arg7[%c0_26, %c0_27] : memref<8x256xbf16, #tpu.memory_space<vmem>>, vector<8x256xbf16>
    %86 = arith.truncf %84 : vector<256x256xf32> to vector<256x256xbf16>
    %cst_28 = arith.constant dense<0.000000e+00> : vector<8x256xf32>
    %87 = tpu.matmul %85, %86, %cst_28 {dimension_numbers = #tpu.dot_dimension_numbers<[1], [0], [0], [1], [0, 0, 1, 1], [], []>} : vector<8x256xbf16>, vector<256x256xbf16>, vector<8x256xf32> -> vector<8x256xf32>
    %c0_29 = arith.constant 0 : index
    %c0_30 = arith.constant 0 : index
    %88 = vector.load %arg8[%c0_29, %c0_30] : memref<8x1xf32, #tpu.memory_space<vmem>>, vector<8x1xf32>
    %89 = vector.broadcast %88 : vector<8x1xf32> to vector<8x256xf32>
    %90 = arith.addf %87, %89 : vector<8x256xf32>
    %c0_31 = arith.constant 0 : index
    %c0_32 = arith.constant 0 : index
    %c0_33 = arith.constant 0 : index
    %91 = vector.load %arg9[%c0_31, %c0_32, %c0_33] : memref<1x8x256xf32, #tpu.memory_space<vmem>>, vector<1x8x256xf32>
    %92 = vector.shape_cast %91 : vector<1x8x256xf32> to vector<8x256xf32>
    %93 = vector.shape_cast %90 : vector<8x256xf32> to vector<1x8x256xf32>
    tpu.vector_store %arg9[%c0_31, %c0_32, %c0_33], %93 {strides = array<i32>} : memref<1x8x256xf32, #tpu.memory_space<vmem>>, vector<1x8x256xf32>,
    %cst_34 = arith.constant dense<0.000000e+00> : vector<256xf32>
    %94 = vector.multi_reduction <add>, %77, %cst_34 [1] : vector<256x256xf32> to vector<256xf32>
    %95 = vector.shape_cast %94 : vector<256xf32> to vector<256x1xf32>
    %96 = tpu.transpose %95, [1, 0] : vector<256x1xf32> -> vector<1x256xf32>
    %97 = vector.shape_cast %96 : vector<1x256xf32> to vector<1x256xf32>
    %98 = vector.broadcast %97 : vector<1x256xf32> to vector<8x256xf32>
    %c0_35 = arith.constant 0 : index
    %c0_36 = arith.constant 0 : index
    %c0_37 = arith.constant 0 : index
    %99 = vector.load %arg11[%c0_35, %c0_36, %c0_37] : memref<1x8x256xf32, #tpu.memory_space<vmem>>, vector<1x8x256xf32>
    %100 = vector.shape_cast %99 : vector<1x8x256xf32> to vector<8x256xf32>
    %101 = vector.shape_cast %98 : vector<8x256xf32> to vector<1x8x256xf32>
    tpu.vector_store %arg11[%c0_35, %c0_36, %c0_37], %101 {strides = array<i32>} : memref<1x8x256xf32, #tpu.memory_space<vmem>>, vector<1x8x256xf32>,
    return
  }
  func.func @transform_0(%arg0: i32, %arg1: i32) -> (i32, i32, i32) {
    %c0_i32 = arith.constant 0 : i32
    %c0_i32_0 = arith.constant 0 : i32
    return %arg0, %c0_i32, %arg1 : i32, i32, i32
  }
  func.func @transform_1(%arg0: i32, %arg1: i32) -> (i32, i32) {
    %c0_i32 = arith.constant 0 : i32
    %c0_i32_0 = arith.constant 0 : i32
    %c0_i32_1 = arith.constant 0 : i32
    return %c0_i32, %c0_i32_0 : i32, i32
  }
  func.func @transform_2(%arg0: i32, %arg1: i32) -> (i32, i32) {
    %c0_i32 = arith.constant 0 : i32
    %c0_i32_0 = arith.constant 0 : i32
    %c0_i32_1 = arith.constant 0 : i32
    return %c0_i32, %c0_i32_0 : i32, i32
  }
  func.func @transform_3(%arg0: i32, %arg1: i32) -> (i32, i32) {
    %c0_i32 = arith.constant 0 : i32
    %c0_i32_0 = arith.constant 0 : i32
    %c0_i32_1 = arith.constant 0 : i32
    return %c0_i32, %c0_i32_0 : i32, i32
  }
  func.func @transform_4(%arg0: i32, %arg1: i32) -> (i32, i32) {
    %c0_i32 = arith.constant 0 : i32
    %c0_i32_0 = arith.constant 0 : i32
    %c0_i32_1 = arith.constant 0 : i32
    return %c0_i32, %c0_i32_0 : i32, i32
  }
  func.func @transform_5(%arg0: i32, %arg1: i32) -> (i32, i32) {
    %c0_i32 = arith.constant 0 : i32
    %c0_i32_0 = arith.constant 0 : i32
    %c0_i32_1 = arith.constant 0 : i32
    return %c0_i32, %c0_i32_0 : i32, i32
  }
  func.func @transform_6(%arg0: i32, %arg1: i32) -> (i32, i32) {
    %c0_i32 = arith.constant 0 : i32
    %c0_i32_0 = arith.constant 0 : i32
    %c0_i32_1 = arith.constant 0 : i32
    return %c0_i32, %c0_i32_0 : i32, i32
  }
  func.func @transform_7(%arg0: i32, %arg1: i32) -> (i32, i32, i32) {
    %c0_i32 = arith.constant 0 : i32
    %c0_i32_0 = arith.constant 0 : i32
    return %arg0, %c0_i32, %arg1 : i32, i32, i32
  }
  func.func @transform_8(%arg0: i32, %arg1: i32) -> (i32, i32, i32) {
    %c0_i32 = arith.constant 0 : i32
    %c0_i32_0 = arith.constant 0 : i32
    return %arg0, %c0_i32, %arg1 : i32, i32, i32
  }
  func.func @transform_9(%arg0: i32, %arg1: i32) -> (i32, i32, i32) {
    %c0_i32 = arith.constant 0 : i32
    %c0_i32_0 = arith.constant 0 : i32
    return %arg0, %arg1, %c0_i32 : i32, i32, i32
  }
}

</mosaic_0001>

<llo_original>
// kernel: squeeze.3
$region0: #{squeeze.3}
  %s0 = inlined_call_operand.vmem [shape: f32[2,256], index: 0, kind: input, shape index: {}]
  %s1 = inlined_call_operand.hbm [shape: f32[2,16,16], index: 1, kind: output, shape index: {}]
  $region1: #{squeeze.3} parent=0
    #allocation0 [shape = 'u8[16384]{0}', space=vmem, size = 0x4000, scoped, tag = 'operand span for operand 1']
    #allocation1 [shape = 's32[1]{0}', space=sflag, size = 0x4, scoped, tag = 'scoped memory for squeeze.3']
    #allocation2 [shape = 'u8[8192]{0}', space=vmem, size = 0x2000, scoped, tag = 'scoped mem for input reshape']
    %2 = vsyncpa [#allocation1], 0
    %s4 = sshllo.u32 0, 2
    %s5 = scalar_lea.vmem %s0, 2
    %v6 = vld [vmem:[%s5] sm:%s4]
    %s7 = scalar_lea.vmem [#allocation2], 8
    %8 = vst [vmem:[%s7] sm:%s4] %v6
    %v9 = vld [vmem:[%s0] sm:%s4]
    %10 = vst [vmem:[#allocation2] sm:%s4] %v9
    %v11 = vld [vmem:[#allocation2] sm:$0x3]
    %vm12 = vcmask 130048
    %13 = vst.msk [vmem:[#allocation0] ss:$16 sm:$0x3] %vm12, %v11
    %s14 = scalar_lea.vmem [#allocation2], 8
    %v15 = vld [vmem:[%s14] sm:$0x3]
    %vm16 = vcmask 130048
    %s17 = scalar_lea.vmem [#allocation0], 8
    %18 = vst.msk [vmem:[%s17] ss:$16 sm:$0x3] %vm16, %v15
    %v19 = vld.sshfl [vmem:[#allocation2] sm:$0xff pattern:$0x99999180]
    %20 = vrot.lane.b32.xlu0 %v19, 112
    %v21 = vpop.permute.xlu0 %20
    %vm22 = vcmask 130048
    %s23 = scalar_lea.vmem [#allocation0], 1
    %24 = vst.msk [vmem:[%s23] ss:$8 sm:$0xf] %vm22, %v21
    %v25 = vld.sshfl [vmem:[#allocation2] sm:$0xff pattern:$0x99999180]
    %26 = vrot.lane.b32.xlu0 %v25, 96
    %v27 = vpop.permute.xlu0 %26
    %vm28 = vcmask 130048
    %s29 = scalar_lea.vmem [#allocation0], 2
    %30 = vst.msk [vmem:[%s29] ss:$8 sm:$0xf] %vm28, %v27
    %v31 = vld.sshfl [vmem:[#allocation2] sm:$0xff pattern:$0x99999180]
    %32 = vrot.lane.b32.xlu0 %v31, 80
    %v33 = vpop.permute.xlu0 %32
    %vm34 = vcmask 130048
    %s35 = scalar_lea.vmem [#allocation0], 3
    %36 = vst.msk [vmem:[%s35] ss:$8 sm:$0xf] %vm34, %v33
    %v37 = vld.sshfl [vmem:[#allocation2] sm:$0xff pattern:$0x99999180]
    %38 = vrot.lane.b32.xlu0 %v37, 64
    %v39 = vpop.permute.xlu0 %38
    %vm40 = vcmask 130048
    %s41 = scalar_lea.vmem [#allocation0], 4
    %42 = vst.msk [vmem:[%s41] ss:$8 sm:$0xf] %vm40, %v39
    %v43 = vld.sshfl [vmem:[#allocation2] sm:$0xff pattern:$0x99999180]
    %44 = vrot.lane.b32.xlu0 %v43, 48
    %v45 = vpop.permute.xlu0 %44
    %vm46 = vcmask 130048
    %s47 = scalar_lea.vmem [#allocation0], 5
    %48 = vst.msk [vmem:[%s47] ss:$8 sm:$0xf] %vm46, %v45
    %v49 = vld.sshfl [vmem:[#allocation2] sm:$0xff pattern:$0x99999180]
    %50 = vrot.lane.b32.xlu0 %v49, 32
    %v51 = vpop.permute.xlu0 %50
    %vm52 = vcmask 130048
    %s53 = scalar_lea.vmem [#allocation0], 6
    %54 = vst.msk [vmem:[%s53] ss:$8 sm:$0xf] %vm52, %v51
    %v55 = vld.sshfl [vmem:[#allocation2] sm:$0xff pattern:$0x99999180]
    %56 = vrot.lane.b32.xlu0 %v55, 16
    %v57 = vpop.permute.xlu0 %56
    %vm58 = vcmask 130048
    %s59 = scalar_lea.vmem [#allocation0], 7
    %60 = vst.msk [vmem:[%s59] ss:$8 sm:$0xf] %vm58, %v57
    %s62 = ssub.s32 512, 512
    %63 = vsyncadd [#allocation1], %s62
    %s65 = sshll.u32 [#allocation0], 4
    %s66 = int_to_ptr.vmem [resolvable:$true] %s65
    %68 = dma.vmem_to_hbm [thread:$0]  %s66, 512, %s1, [#allocation1]
    %69 = dma.done [#allocation1], 512
    %70 = vsyncpa [#allocation1], 1

// kernel: multimodal_mdafn_forward.1
$region0: #{multimodal_mdafn_forward.1}
  #allocation0 [shape = 'u32[]', space=smem, size = 0x4, offset = 0x4, fixed_abs, tag = 'smem constant byte address 0x4 - core index']
  #allocation1 [shape = 'u32[144,128]{1,0:T(1,128)}', space=vmem, size = 0x12000, scoped, tag = 'internal scratch']
  %s0 = inlined_call_operand.vmem [shape: f32[2,6,256], index: 0, kind: input, shape index: {}]
  %s1 = inlined_call_operand.vmem [shape: f32[32,3], index: 1, kind: input, shape index: {}]
  %s2 = inlined_call_operand.vmem [shape: f32[32,1], index: 2, kind: input, shape index: {}]
  %s3 = inlined_call_operand.vmem [shape: bf16[256,32], index: 3, kind: input, shape index: {}]
  %s4 = inlined_call_operand.vmem [shape: f32[256,1], index: 4, kind: input, shape index: {}]
  %s5 = inlined_call_operand.vmem [shape: bf16[8,256], index: 5, kind: input, shape index: {}]
  %s6 = inlined_call_operand.vmem [shape: f32[8,1], index: 6, kind: input, shape index: {}]
  %s7 = inlined_call_operand.vmem [shape: f32[2,8,256], index: 7, kind: output, shape index: {0}]
  %s8 = inlined_call_operand.vmem [shape: f32[2,2,256], index: 8, kind: output, shape index: {1}]
  %s9 = inlined_call_operand.vmem [shape: f32[2,8,256], index: 9, kind: output, shape index: {2}]
  %10 = xla_tuple %s7, %s8, %s9
  %s11 = sld [smem:[#allocation0]]
  $region77: #{multimodal_mdafn_forward.1} parent=0
    _
  %s13 = ssub.s32 1, %s11
  %s14 = scalar_select 0, %s13, %s11
  loop: start=0, step=1, limit=4
  $region2: #{multimodal_mdafn_forward.1} parent=0 // loop_pre_header
    _
  $region3: #{multimodal_mdafn_forward.1} parent=0 // loop_header
    %s16 = sphi 0, %s20
    %p17 = scmp.ge.s32.totalorder %s16, 4
    %s23 = sphi 0, %s35
    %s24 = sphi 0, %s31
    %s25 = sphi 0, %s23
    %s26 = sphi 0, %s24
    %s27 = sphi 0, %s25
    %s28 = sphi 0, %s26
    %s40 = sphi 0, %s42
    %s43 = sphi 0, %s40
    %s44 = sphi 0, %s43
    %s60 = sphi 0, %s44
    %s64 = sphi 0, %s64
    %s66 = sphi 0, %s64
    %s67 = sphi 0, %s66
    %s81 = sphi 0, %s67
    %s85 = sphi 0, %s85
    %s87 = sphi 0, %s85
    %s88 = sphi 0, %s87
    %s102 = sphi 0, %s88
    %s106 = sphi 0, %s106
    %s108 = sphi 0, %s106
    %s109 = sphi 0, %s108
    %s123 = sphi 0, %s109
    %s127 = sphi 0, %s127
    %s129 = sphi 0, %s127
    %s130 = sphi 0, %s129
    %s144 = sphi 0, %s130
    %s148 = sphi 0, %s148
    %s150 = sphi 0, %s148
    %s151 = sphi 0, %s150
    %s165 = sphi 0, %s151
    %s169 = sphi 0, %s169
    %s171 = sphi 0, %s169
    %s172 = sphi 0, %s171
    %s186 = sphi 0, %s172
    %s194 = sphi 0, %s196
    %s197 = sphi 0, %s194
    %s198 = sphi 0, %s197
    %s214 = sphi 0, %s198
    %s222 = sphi 0, %s224
    %s225 = sphi 0, %s222
    %s226 = sphi 0, %s225
    %s242 = sphi 0, %s226
    %s250 = sphi 0, %s252
    %s253 = sphi 0, %s250
    %s254 = sphi 0, %s253
    %s270 = sphi 0, %s254
  $region4: #{multimodal_mdafn_forward.1} parent=0 // loop_header_branch
    %19 = sbr.rel (%p17) target = $region8
  $region5: #{multimodal_mdafn_forward.1} parent=0 // loop_body
    %s21 = ssub.s32 %s16, 1
    %s22 = ssub.s32 %s16, 2
    %s29 = sadd.s32 1, %s24
    %p30 = scmp.ge.s32.totalorder %s29, 1
    %s31 = scalar_select %p30, 0, %s29
    %s32 = sadd.s32 1, %s23
    %s33 = scalar_select %p30, %s32, %s23
    %p34 = scmp.ge.s32.totalorder %s33, 2
    %s35 = scalar_select %p34, 0, %s33
    %s36 = ssub.s32 %s23, %s35
    %s37 = ssub.s32 %s24, %s31
    %s38 = sor.u32 %s36, %s37
    %p39 = scmp.eq.s32.totalorder %s38, 0
    %s41 = sadd.s32 %s40, 1
    %s42 = scalar_select %p39, %s40, %s41
    %p45 = pneg %p39
    %p46 = scmp.eq.s32.totalorder %s16, 1
    %p47 = por %p45, %p46
    %p48 = scmp.ne.s32.totalorder %s40, %s43
    %p49 = scmp.eq.s32.totalorder %s16, 0
    %p50 = por %p48, %p49
    %p51 = scmp.ne.s32.totalorder %s40, %s43
    %p52 = scmp.eq.s32.totalorder %s21, 1
    %p53 = por %p51, %p52
    %p54 = scmp.ne.s32.totalorder %s43, %s44
    %p55 = scmp.eq.s32.totalorder %s21, 0
    %p56 = por %p54, %p55
    %p57 = scmp.ne.s32.totalorder %s43, %s44
    %p58 = scmp.eq.s32.totalorder %s22, 1
    %p59 = por %p57, %p58
    %p61 = scmp.ne.s32.totalorder %s44, %s60
    %p62 = scmp.eq.s32.totalorder %s22, 0
    %p63 = por %p61, %p62
    %s65 = sadd.s32 %s64, 1
    %p68 = scmp.eq.s32.totalorder %s16, 1
    %p69 = scmp.ne.s32.totalorder %s64, %s66
    %p70 = scmp.eq.s32.totalorder %s16, 0
    %p71 = por %p69, %p70
    %p72 = scmp.ne.s32.totalorder %s64, %s66
    %p73 = scmp.eq.s32.totalorder %s21, 1
    %p74 = por %p72, %p73
    %p75 = scmp.ne.s32.totalorder %s66, %s67
    %p76 = scmp.eq.s32.totalorder %s21, 0
    %p77 = por %p75, %p76
    %p78 = scmp.ne.s32.totalorder %s66, %s67
    %p79 = scmp.eq.s32.totalorder %s22, 1
    %p80 = por %p78, %p79
    %p82 = scmp.ne.s32.totalorder %s67, %s81
    %p83 = scmp.eq.s32.totalorder %s22, 0
    %p84 = por %p82, %p83
    %s86 = sadd.s32 %s85, 1
    %p89 = scmp.eq.s32.totalorder %s16, 1
    %p90 = scmp.ne.s32.totalorder %s85, %s87
    %p91 = scmp.eq.s32.totalorder %s16, 0
    %p92 = por %p90, %p91
    %p93 = scmp.ne.s32.totalorder %s85, %s87
    %p94 = scmp.eq.s32.totalorder %s21, 1
    %p95 = por %p93, %p94
    %p96 = scmp.ne.s32.totalorder %s87, %s88
    %p97 = scmp.eq.s32.totalorder %s21, 0
    %p98 = por %p96, %p97
    %p99 = scmp.ne.s32.totalorder %s87, %s88
    %p100 = scmp.eq.s32.totalorder %s22, 1
    %p101 = por %p99, %p100
    %p103 = scmp.ne.s32.totalorder %s88, %s102
    %p104 = scmp.eq.s32.totalorder %s22, 0
    %p105 = por %p103, %p104
    %s107 = sadd.s32 %s106, 1
    %p110 = scmp.eq.s32.totalorder %s16, 1
    %p111 = scmp.ne.s32.totalorder %s106, %s108
    %p112 = scmp.eq.s32.totalorder %s16, 0
    %p113 = por %p111, %p112
    %p114 = scmp.ne.s32.totalorder %s106, %s108
    %p115 = scmp.eq.s32.totalorder %s21, 1
    %p116 = por %p114, %p115
    %p117 = scmp.ne.s32.totalorder %s108, %s109
    %p118 = scmp.eq.s32.totalorder %s21, 0
    %p119 = por %p117, %p118
    %p120 = scmp.ne.s32.totalorder %s108, %s109
    %p121 = scmp.eq.s32.totalorder %s22, 1
    %p122 = por %p120, %p121
    %p124 = scmp.ne.s32.totalorder %s109, %s123
    %p125 = scmp.eq.s32.totalorder %s22, 0
    %p126 = por %p124, %p125
    %s128 = sadd.s32 %s127, 1
    %p131 = scmp.eq.s32.totalorder %s16, 1
    %p132 = scmp.ne.s32.totalorder %s127, %s129
    %p133 = scmp.eq.s32.totalorder %s16, 0
    %p134 = por %p132, %p133
    %p135 = scmp.ne.s32.totalorder %s127, %s129
    %p136 = scmp.eq.s32.totalorder %s21, 1
    %p137 = por %p135, %p136
    %p138 = scmp.ne.s32.totalorder %s129, %s130
    %p139 = scmp.eq.s32.totalorder %s21, 0
    %p140 = por %p138, %p139
    %p141 = scmp.ne.s32.totalorder %s129, %s130
    %p142 = scmp.eq.s32.totalorder %s22, 1
    %p143 = por %p141, %p142
    %p145 = scmp.ne.s32.totalorder %s130, %s144
    %p146 = scmp.eq.s32.totalorder %s22, 0
    %p147 = por %p145, %p146
    %s149 = sadd.s32 %s148, 1
    %p152 = scmp.eq.s32.totalorder %s16, 1
    %p153 = scmp.ne.s32.totalorder %s148, %s150
    %p154 = scmp.eq.s32.totalorder %s16, 0
    %p155 = por %p153, %p154
    %p156 = scmp.ne.s32.totalorder %s148, %s150
    %p157 = scmp.eq.s32.totalorder %s21, 1
    %p158 = por %p156, %p157
    %p159 = scmp.ne.s32.totalorder %s150, %s151
    %p160 = scmp.eq.s32.totalorder %s21, 0
    %p161 = por %p159, %p160
    %p162 = scmp.ne.s32.totalorder %s150, %s151
    %p163 = scmp.eq.s32.totalorder %s22, 1
    %p164 = por %p162, %p163
    %p166 = scmp.ne.s32.totalorder %s151, %s165
    %p167 = scmp.eq.s32.totalorder %s22, 0
    %p168 = por %p166, %p167
    %s170 = sadd.s32 %s169, 1
    %p173 = scmp.eq.s32.totalorder %s16, 1
    %p174 = scmp.ne.s32.totalorder %s169, %s171
    %p175 = scmp.eq.s32.totalorder %s16, 0
    %p176 = por %p174, %p175
    %p177 = scmp.ne.s32.totalorder %s169, %s171
    %p178 = scmp.eq.s32.totalorder %s21, 1
    %p179 = por %p177, %p178
    %p180 = scmp.ne.s32.totalorder %s171, %s172
    %p181 = scmp.eq.s32.totalorder %s21, 0
    %p182 = por %p180, %p181
    %p183 = scmp.ne.s32.totalorder %s171, %s172
    %p184 = scmp.eq.s32.totalorder %s22, 1
    %p185 = por %p183, %p184
    %p187 = scmp.ne.s32.totalorder %s172, %s186
    %p188 = scmp.eq.s32.totalorder %s22, 0
    %p189 = por %p187, %p188
    %s190 = ssub.s32 %s23, %s35
    %s191 = ssub.s32 %s24, %s31
    %s192 = sor.u32 %s190, %s191
    %p193 = scmp.eq.s32.totalorder %s192, 0
    %s195 = sadd.s32 %s194, 1
    %s196 = scalar_select %p193, %s194, %s195
    %p199 = pneg %p193
    %p200 = scmp.eq.s32.totalorder %s16, 1
    %p201 = por %p199, %p200
    %p202 = scmp.ne.s32.totalorder %s194, %s197
    %p203 = scmp.eq.s32.totalorder %s16, 0
    %p204 = por %p202, %p203
    %p205 = scmp.ne.s32.totalorder %s194, %s197
    %p206 = scmp.eq.s32.totalorder %s21, 1
    %p207 = por %p205, %p206
    %p208 = scmp.ne.s32.totalorder %s197, %s198
    %p209 = scmp.eq.s32.totalorder %s21, 0
    %p210 = por %p208, %p209
    %p211 = scmp.ne.s32.totalorder %s197, %s198
    %p212 = scmp.eq.s32.totalorder %s22, 1
    %p213 = por %p211, %p212
    %p215 = scmp.ne.s32.totalorder %s198, %s214
    %p216 = scmp.eq.s32.totalorder %s22, 0
    %p217 = por %p215, %p216
    %s218 = ssub.s32 %s23, %s35
    %s219 = ssub.s32 %s24, %s31
    %s220 = sor.u32 %s218, %s219
    %p221 = scmp.eq.s32.totalorder %s220, 0
    %s223 = sadd.s32 %s222, 1
    %s224 = scalar_select %p221, %s222, %s223
    %p227 = pneg %p221
    %p228 = scmp.eq.s32.totalorder %s16, 1
    %p229 = por %p227, %p228
    %p230 = scmp.ne.s32.totalorder %s222, %s225
    %p231 = scmp.eq.s32.totalorder %s16, 0
    %p232 = por %p230, %p231
    %p233 = scmp.ne.s32.totalorder %s222, %s225
    %p234 = scmp.eq.s32.totalorder %s21, 1
    %p235 = por %p233, %p234
    %p236 = scmp.ne.s32.totalorder %s225, %s226
    %p237 = scmp.eq.s32.totalorder %s21, 0
    %p238 = por %p236, %p237
    %p239 = scmp.ne.s32.totalorder %s225, %s226
    %p240 = scmp.eq.s32.totalorder %s22, 1
    %p241 = por %p239, %p240
    %p243 = scmp.ne.s32.totalorder %s226, %s242
    %p244 = scmp.eq.s32.totalorder %s22, 0
    %p245 = por %p243, %p244
    %s246 = ssub.s32 %s23, %s35
    %s247 = ssub.s32 %s24, %s31
    %s248 = sor.u32 %s246, %s247
    %p249 = scmp.eq.s32.totalorder %s248, 0
    %s251 = sadd.s32 %s250, 1
    %s252 = scalar_select %p249, %s250, %s251
    %p255 = pneg %p249
    %p256 = scmp.eq.s32.totalorder %s16, 1
    %p257 = por %p255, %p256
    %p258 = scmp.ne.s32.totalorder %s250, %s253
    %p259 = scmp.eq.s32.totalorder %s16, 0
    %p260 = por %p258, %p259
    %p261 = scmp.ne.s32.totalorder %s250, %s253
    %p262 = scmp.eq.s32.totalorder %s21, 1
    %p263 = por %p261, %p262
    %p264 = scmp.ne.s32.totalorder %s253, %s254
    %p265 = scmp.eq.s32.totalorder %s21, 0
    %p266 = por %p264, %p265
    %p267 = scmp.ne.s32.totalorder %s253, %s254
    %p268 = scmp.eq.s32.totalorder %s22, 1
    %p269 = por %p267, %p268
    %p271 = scmp.ne.s32.totalorder %s254, %s270
    %p272 = scmp.eq.s32.totalorder %s22, 0
    %p273 = por %p271, %p272
    %p274 = scmp.le.s32.totalorder 1, %s16
    %p275 = scmp.lt.s32.totalorder %s16, 3
    %p276 = pnand %p274, %p275
    %p277 = pneg %p276
    // Predicated region
    $region9: #{multimodal_mdafn_forward.1} parent=5 // pred_check
      _
    $region10: #{multimodal_mdafn_forward.1} parent=5 // pred_check_branch
      %279 = sbr.rel (%p276) target = $region12
    $region11: #{multimodal_mdafn_forward.1} parent=5 // pred_region
      %s280 = ssub.s32 %s16, 1
      // Predicated region
      $region13: #{multimodal_mdafn_forward.1} parent=11 // pred_check
        %p281 = pneg %p77
      $region14: #{multimodal_mdafn_forward.1} parent=11 // pred_check_branch
        %283 = sbr.rel (%p281) target = $region16
      $region15: #{multimodal_mdafn_forward.1} parent=11 // pred_region
        _
      $region16: #{multimodal_mdafn_forward.1} parent=11 // pred_fallthru
        _
      // Predicated region
      $region17: #{multimodal_mdafn_forward.1} parent=11 // pred_check
        %p284 = pneg %p98
      $region18: #{multimodal_mdafn_forward.1} parent=11 // pred_check_branch
        %286 = sbr.rel (%p284) target = $region20
      $region19: #{multimodal_mdafn_forward.1} parent=11 // pred_region
        _
      $region20: #{multimodal_mdafn_forward.1} parent=11 // pred_fallthru
        _
      // Predicated region
      $region21: #{multimodal_mdafn_forward.1} parent=11 // pred_check
        %p287 = pneg %p119
      $region22: #{multimodal_mdafn_forward.1} parent=11 // pred_check_branch
        %289 = sbr.rel (%p287) target = $region24
      $region23: #{multimodal_mdafn_forward.1} parent=11 // pred_region
        _
      $region24: #{multimodal_mdafn_forward.1} parent=11 // pred_fallthru
        _
      // Predicated region
      $region25: #{multimodal_mdafn_forward.1} parent=11 // pred_check
        %p290 = pneg %p140
      $region26: #{multimodal_mdafn_forward.1} parent=11 // pred_check_branch
        %292 = sbr.rel (%p290) target = $region28
      $region27: #{multimodal_mdafn_forward.1} parent=11 // pred_region
        _
      $region28: #{multimodal_mdafn_forward.1} parent=11 // pred_fallthru
        _
      // Predicated region
      $region29: #{multimodal_mdafn_forward.1} parent=11 // pred_check
        %p293 = pneg %p161
      $region30: #{multimodal_mdafn_forward.1} parent=11 // pred_check_branch
        %295 = sbr.rel (%p293) target = $region32
      $region31: #{multimodal_mdafn_forward.1} parent=11 // pred_region
        _
      $region32: #{multimodal_mdafn_forward.1} parent=11 // pred_fallthru
        _
      // Predicated region
      $region33: #{multimodal_mdafn_forward.1} parent=11 // pred_check
        %p296 = pneg %p182
      $region34: #{multimodal_mdafn_forward.1} parent=11 // pred_check_branch
        %298 = sbr.rel (%p296) target = $region36
      $region35: #{multimodal_mdafn_forward.1} parent=11 // pred_region
        _
      $region36: #{multimodal_mdafn_forward.1} parent=11 // pred_fallthru
        _
    $region12: #{multimodal_mdafn_forward.1} parent=5 // pred_fallthru
      _
    %p299 = scmp.lt.s32.totalorder %s16, 2
    // Predicated region
    $region37: #{multimodal_mdafn_forward.1} parent=5 // pred_check
      %p300 = pneg %p299
    $region38: #{multimodal_mdafn_forward.1} parent=5 // pred_check_branch
      %302 = sbr.rel (%p300) target = $region40
    $region39: #{multimodal_mdafn_forward.1} parent=5 // pred_region
      // Predicated region
      $region41: #{multimodal_mdafn_forward.1} parent=39 // pred_check
        %p303 = pneg %p50
      $region42: #{multimodal_mdafn_forward.1} parent=39 // pred_check_branch
        %305 = sbr.rel (%p303) target = $region44
      $region43: #{multimodal_mdafn_forward.1} parent=39 // pred_region
        %s306 = smul.u32 2, %s24
        %p307 = scmp.lt.s32.totalorder %s23, 1
        %s308 = scalar_select %p307, %s23, 1
        %p309 = scmp.lt.s32.totalorder %s306, 1
        %s310 = scalar_select %p309, %s306, 1
        %s311 = smul.addr %s308, 2
        %s312 = sadd.s32 %s310, %s311
        %s313 = smul.addr %s312, 8
        %s314 = scalar_lea.vmem %s0, %s313
        %s315 = smul.u32 2, %s24
      $region44: #{multimodal_mdafn_forward.1} parent=39 // pred_fallthru
        _
    $region40: #{multimodal_mdafn_forward.1} parent=5 // pred_fallthru
      _
    %p316 = scmp.le.s32.totalorder 1, %s16
    %p317 = scmp.lt.s32.totalorder %s16, 3
    %p318 = pnand %p316, %p317
    %p319 = pneg %p318
    // Predicated region
    $region45: #{multimodal_mdafn_forward.1} parent=5 // pred_check
      _
    $region46: #{multimodal_mdafn_forward.1} parent=5 // pred_check_branch
      %321 = sbr.rel (%p318) target = $region48
    $region47: #{multimodal_mdafn_forward.1} parent=5 // pred_region
      %s322 = ssub.s32 %s16, 1
      %s323 = smul.u32 2, %s26
      %p324 = scmp.lt.s32.totalorder %s25, 1
      %s325 = scalar_select %p324, %s25, 1
      %p326 = scmp.lt.s32.totalorder %s323, 1
      %s327 = scalar_select %p326, %s323, 1
      %s328 = smul.addr %s325, 2
      %s329 = sadd.s32 %s327, %s328
      %s330 = smul.addr %s329, 8
      %s331 = scalar_lea.vmem %s0, %s330
      %p332 = pneg %p56
      %p333 = pneg %p53
      %p334 = pneg %p77
      %p335 = pneg %p74
      %p336 = pneg %p98
      %p337 = pneg %p95
      %p338 = pneg %p119
      %p339 = pneg %p116
      %p340 = pneg %p140
      %p341 = pneg %p137
      %p342 = pneg %p161
      %p343 = pneg %p158
      %p344 = pneg %p182
      %p345 = pneg %p179
      %p346 = pneg %p210
      %p347 = pneg %p207
      %s348 = smul.u32 2, %s26
      %p349 = scmp.lt.s32.totalorder %s25, 1
      %s350 = scalar_select %p349, %s25, 1
      %p351 = scmp.lt.s32.totalorder %s348, 1
      %s352 = scalar_select %p351, %s348, 1
      %s353 = smul.addr %s350, 2
      %s354 = sadd.s32 %s352, %s353
      %s355 = smul.addr %s354, 8
      %s356 = scalar_lea.vmem %s7, %s355
      %p357 = pneg %p238
      %p358 = pneg %p235
      %s359 = smul.u32 2, %s26
      %p360 = scmp.lt.s32.totalorder %s25, 1
      %s361 = scalar_select %p360, %s25, 1
      %p362 = scmp.lt.s32.totalorder %s359, 1
      %s363 = scalar_select %p362, %s359, 1
      %s364 = smul.addr %s361, 2
      %s365 = sadd.s32 %s363, %s364
      %s366 = smul.addr %s365, 2
      %s367 = scalar_lea.vmem %s8, %s366
      %p368 = pneg %p266
      %p369 = pneg %p263
      %p370 = scmp.lt.s32.totalorder %s25, 1
      %s371 = scalar_select %p370, %s25, 1
      %p372 = scmp.lt.s32.totalorder %s26, 0
      %s373 = scalar_select %p372, %s26, 0
      %s374 = smul.addr %s373, 2
      %s375 = smul.addr %s371, 2
      %s376 = sadd.s32 %s374, %s375
      %s377 = smul.addr %s376, 8
      %s378 = scalar_lea.vmem %s9, %s377
      %s379 = smul.u32 2, %s26
      %p380 = scmp.lt.s32.totalorder %s25, 1
      %s381 = scalar_select %p380, %s25, 1
      %p382 = scmp.lt.s32.totalorder %s379, 1
      %s383 = scalar_select %p382, %s379, 1
      %s384 = smul.addr %s381, 2
      %s385 = sadd.s32 %s383, %s384
      %s386 = smul.addr %s385, 8
      %s387 = scalar_lea.vmem %s0, %s386
      %s388 = smul.u32 2, %s26
      %s389 = smul.u32 2, %s26
      %p390 = scmp.lt.s32.totalorder %s25, 1
      %s391 = scalar_select %p390, %s25, 1
      %p392 = scmp.lt.s32.totalorder %s389, 1
      %s393 = scalar_select %p392, %s389, 1
      %s394 = smul.addr %s391, 2
      %s395 = sadd.s32 %s393, %s394
      %s396 = smul.addr %s395, 8
      %s397 = scalar_lea.vmem %s7, %s396
      %s398 = smul.u32 2, %s26
      %s399 = smul.u32 2, %s26
      %p400 = scmp.lt.s32.totalorder %s25, 1
      %s401 = scalar_select %p400, %s25, 1
      %p402 = scmp.lt.s32.totalorder %s399, 1
      %s403 = scalar_select %p402, %s399, 1
      %s404 = smul.addr %s401, 2
      %s405 = sadd.s32 %s403, %s404
      %s406 = smul.addr %s405, 2
      %s407 = scalar_lea.vmem %s8, %s406
      %s408 = smul.u32 2, %s26
      %p409 = scmp.lt.s32.totalorder %s25, 1
      %s410 = scalar_select %p409, %s25, 1
      %p411 = scmp.lt.s32.totalorder %s26, 0
      %s412 = scalar_select %p411, %s26, 0
      %s413 = smul.addr %s412, 2
      %s414 = smul.addr %s410, 2
      %s415 = sadd.s32 %s413, %s414
      %s416 = smul.addr %s415, 8
      %s417 = scalar_lea.vmem %s9, %s416
      %v419 = vld [vmem:[%s387] sm:$0x3f]
      %v420 = vld [vmem:[%s387 + $0x8] sm:$0x3f]
      %v421 = vld [vmem:[%s1] sm:$0xff]
      %v422 = vld [vmem:[%s1 + $0x8] sm:$0xff]
      %v423 = vld [vmem:[%s1 + $0x10] sm:$0xff]
      %v424 = vld [vmem:[%s1 + $0x18] sm:$0xff]
      %v425 = vld [vmem:[%s2] sm:$0xff]
      %v426 = vld [vmem:[%s2 + $0x8] sm:$0xff]
      %v427 = vld [vmem:[%s2 + $0x10] sm:$0xff]
      %v428 = vld [vmem:[%s2 + $0x18] sm:$0xff]
      %430 = vset.pattern.permute.xlu0 0
      %431 = vperm.xlu0 %430, %v421
      %v432 = vpop.permute.xlu0 %431
      %435 = vset.pattern.permute.xlu0 0
      %436 = vperm.xlu0 %435, %v422
      %v437 = vpop.permute.xlu0 %436
      %440 = vset.pattern.permute.xlu0 0
      %441 = vperm.xlu0 %440, %v423
      %v442 = vpop.permute.xlu0 %441
      %445 = vset.pattern.permute.xlu0 0
      %446 = vperm.xlu0 %445, %v424
      %v447 = vpop.permute.xlu0 %446
      %v449 = vlaneseq
      %v450 = vshrl.u32 %v449, 7
      %v451 = vsub.s32 0, %v450
      %v452 = vrot.slane %v419, %v451
      %v453 = vlaneseq
      %v454 = vshrl.u32 %v453, 7
      %v455 = vsub.s32 0, %v454
      %v456 = vrot.slane %v420, %v455
      %v457 = vmul.f32 %v432, %v452
      %v458 = vmul.f32 %v432, %v456
      %v459 = vmul.f32 %v437, %v452
      %v460 = vmul.f32 %v437, %v456
      %v461 = vmul.f32 %v442, %v452
      %v462 = vmul.f32 %v442, %v456
      %v463 = vmul.f32 %v447, %v452
      %v464 = vmul.f32 %v447, %v456
      %465 = vset.pattern.permute.xlu0 1
      %466 = vperm.xlu0 %465, %v421
      %v467 = vpop.permute.xlu0 %466
      %469 = vset.pattern.permute.xlu0 1
      %470 = vperm.xlu0 %469, %v422
      %v471 = vpop.permute.xlu0 %470
      %473 = vset.pattern.permute.xlu0 1
      %474 = vperm.xlu0 %473, %v423
      %v475 = vpop.permute.xlu0 %474
      %477 = vset.pattern.permute.xlu0 1
      %478 = vperm.xlu0 %477, %v424
      %v479 = vpop.permute.xlu0 %478
      %v481 = vlaneseq
      %v482 = vshrl.u32 %v481, 7
      %v483 = vsub.s32 1, %v482
      %v484 = vrot.slane %v419, %v483
      %v485 = vlaneseq
      %v486 = vshrl.u32 %v485, 7
      %v487 = vsub.s32 1, %v486
      %v488 = vrot.slane %v420, %v487
      %v489 = vmul.f32 %v467, %v484
      %v490 = vmul.f32 %v467, %v488
      %v491 = vmul.f32 %v471, %v484
      %v492 = vmul.f32 %v471, %v488
      %v493 = vmul.f32 %v475, %v484
      %v494 = vmul.f32 %v475, %v488
      %v495 = vmul.f32 %v479, %v484
      %v496 = vmul.f32 %v479, %v488
      %v497 = vadd.f32 %v457, %v489
      %v498 = vadd.f32 %v458, %v490
      %v499 = vadd.f32 %v459, %v491
      %v500 = vadd.f32 %v460, %v492
      %v501 = vadd.f32 %v461, %v493
      %v502 = vadd.f32 %v462, %v494
      %v503 = vadd.f32 %v463, %v495
      %v504 = vadd.f32 %v464, %v496
      %505 = vset.pattern.permute.xlu0 2
      %506 = vperm.xlu0 %505, %v421
      %v507 = vpop.permute.xlu0 %506
      %509 = vset.pattern.permute.xlu0 2
      %510 = vperm.xlu0 %509, %v422
      %v511 = vpop.permute.xlu0 %510
      %513 = vset.pattern.permute.xlu0 2
      %514 = vperm.xlu0 %513, %v423
      %v515 = vpop.permute.xlu0 %514
      %517 = vset.pattern.permute.xlu0 2
      %518 = vperm.xlu0 %517, %v424
      %v519 = vpop.permute.xlu0 %518
      %v521 = vlaneseq
      %v522 = vshrl.u32 %v521, 7
      %v523 = vsub.s32 2, %v522
      %v524 = vrot.slane %v419, %v523
      %v525 = vlaneseq
      %v526 = vshrl.u32 %v525, 7
      %v527 = vsub.s32 2, %v526
      %v528 = vrot.slane %v420, %v527
      %v529 = vmul.f32 %v507, %v524
      %v530 = vmul.f32 %v507, %v528
      %v531 = vmul.f32 %v511, %v524
      %v532 = vmul.f32 %v511, %v528
      %v533 = vmul.f32 %v515, %v524
      %v534 = vmul.f32 %v515, %v528
      %v535 = vmul.f32 %v519, %v524
      %v536 = vmul.f32 %v519, %v528
      %v537 = vadd.f32 %v497, %v529
      %v538 = vadd.f32 %v498, %v530
      %v539 = vadd.f32 %v499, %v531
      %v540 = vadd.f32 %v500, %v532
      %v541 = vadd.f32 %v501, %v533
      %v542 = vadd.f32 %v502, %v534
      %v543 = vadd.f32 %v503, %v535
      %v544 = vadd.f32 %v504, %v536
      %546 = vset.pattern.permute.xlu0 0
      %547 = vperm.xlu0 %546, %v425
      %v548 = vpop.permute.xlu0 %547
      %551 = vset.pattern.permute.xlu0 0
      %552 = vperm.xlu0 %551, %v426
      %v553 = vpop.permute.xlu0 %552
      %556 = vset.pattern.permute.xlu0 0
      %557 = vperm.xlu0 %556, %v427
      %v558 = vpop.permute.xlu0 %557
      %561 = vset.pattern.permute.xlu0 0
      %562 = vperm.xlu0 %561, %v428
      %v563 = vpop.permute.xlu0 %562
      %v565 = vadd.f32 %v537, %v548
      %v566 = vadd.f32 %v538, %v548
      %v567 = vadd.f32 %v539, %v553
      %v568 = vadd.f32 %v540, %v553
      %v569 = vadd.f32 %v541, %v558
      %v570 = vadd.f32 %v542, %v558
      %v571 = vadd.f32 %v543, %v563
      %v572 = vadd.f32 %v544, %v563
      %v573 = vmax.f32 %v565, 0.0
      %v574 = vmax.f32 %v566, 0.0
      %v575 = vmax.f32 %v567, 0.0
      %v576 = vmax.f32 %v568, 0.0
      %v577 = vmax.f32 %v569, 0.0
      %v578 = vmax.f32 %v570, 0.0
      %v579 = vmax.f32 %v571, 0.0
      %v580 = vmax.f32 %v572, 0.0
      %v581 = vlaneseq
      %v582 = vshrl.u32 %v581, 7
      %v583 = vsub.s32 3, %v582
      %v584 = vrot.slane %v419, %v583
      %v585 = vlaneseq
      %v586 = vshrl.u32 %v585, 7
      %v587 = vsub.s32 3, %v586
      %v588 = vrot.slane %v420, %v587
      %v589 = vmul.f32 %v432, %v584
      %v590 = vmul.f32 %v432, %v588
      %v591 = vmul.f32 %v437, %v584
      %v592 = vmul.f32 %v437, %v588
      %v593 = vmul.f32 %v442, %v584
      %v594 = vmul.f32 %v442, %v588
      %v595 = vmul.f32 %v447, %v584
      %v596 = vmul.f32 %v447, %v588
      %v597 = vlaneseq
      %v598 = vshrl.u32 %v597, 7
      %v599 = vsub.s32 4, %v598
      %v600 = vrot.slane %v419, %v599
      %v601 = vlaneseq
      %v602 = vshrl.u32 %v601, 7
      %v603 = vsub.s32 4, %v602
      %v604 = vrot.slane %v420, %v603
      %v605 = vmul.f32 %v467, %v600
      %v606 = vmul.f32 %v467, %v604
      %v607 = vmul.f32 %v471, %v600
      %v608 = vmul.f32 %v471, %v604
      %v609 = vmul.f32 %v475, %v600
      %v610 = vmul.f32 %v475, %v604
      %v611 = vmul.f32 %v479, %v600
      %v612 = vmul.f32 %v479, %v604
      %v613 = vadd.f32 %v589, %v605
      %v614 = vadd.f32 %v590, %v606
      %v615 = vadd.f32 %v591, %v607
      %v616 = vadd.f32 %v592, %v608
      %v617 = vadd.f32 %v593, %v609
      %v618 = vadd.f32 %v594, %v610
      %v619 = vadd.f32 %v595, %v611
      %v620 = vadd.f32 %v596, %v612
      %v621 = vlaneseq
      %v622 = vshrl.u32 %v621, 7
      %v623 = vsub.s32 5, %v622
      %v624 = vrot.slane %v419, %v623
      %v625 = vlaneseq
      %v626 = vshrl.u32 %v625, 7
      %v627 = vsub.s32 5, %v626
      %v628 = vrot.slane %v420, %v627
      %v629 = vmul.f32 %v507, %v624
      %v630 = vmul.f32 %v507, %v628
      %v631 = vmul.f32 %v511, %v624
      %v632 = vmul.f32 %v511, %v628
      %v633 = vmul.f32 %v515, %v624
      %v634 = vmul.f32 %v515, %v628
      %v635 = vmul.f32 %v519, %v624
      %v636 = vmul.f32 %v519, %v628
      %v637 = vadd.f32 %v613, %v629
      %v638 = vadd.f32 %v614, %v630
      %v639 = vadd.f32 %v615, %v631
      %v640 = vadd.f32 %v616, %v632
      %v641 = vadd.f32 %v617, %v633
      %v642 = vadd.f32 %v618, %v634
      %v643 = vadd.f32 %v619, %v635
      %v644 = vadd.f32 %v620, %v636
      %v645 = vadd.f32 %v637, %v548
      %v646 = vadd.f32 %v638, %v548
      %v647 = vadd.f32 %v639, %v553
      %v648 = vadd.f32 %v640, %v553
      %v649 = vadd.f32 %v641, %v558
      %v650 = vadd.f32 %v642, %v558
      %v651 = vadd.f32 %v643, %v563
      %v652 = vadd.f32 %v644, %v563
      %v653 = vmax.f32 %v645, 0.0
      %v654 = vmax.f32 %v646, 0.0
      %v655 = vmax.f32 %v647, 0.0
      %v656 = vmax.f32 %v648, 0.0
      %v657 = vmax.f32 %v649, 0.0
      %v658 = vmax.f32 %v650, 0.0
      %v659 = vmax.f32 %v651, 0.0
      %v660 = vmax.f32 %v652, 0.0
      %v661 = vadd.f32 %v573, %v575
      %v662 = vadd.f32 %v661, %v577
      %v663 = vadd.f32 %v662, %v579
      %v664 = vrot.slane %v663, 4
      %v665 = vadd.f32 %v663, %v664
      %v666 = vrot.slane %v665, 2
      %v667 = vadd.f32 %v665, %v666
      %v668 = vrot.slane %v667, 1
      %v669 = vadd.f32 %v667, %v668
      %v670 = vadd.f32 %v574, %v576
      %v671 = vadd.f32 %v670, %v578
      %v672 = vadd.f32 %v671, %v580
      %v673 = vrot.slane %v672, 4
      %v674 = vadd.f32 %v672, %v673
      %v675 = vrot.slane %v674, 2
      %v676 = vadd.f32 %v674, %v675
      %v677 = vrot.slane %v676, 1
      %v678 = vadd.f32 %v676, %v677
      %v679 = vrcp.pop 32.0
      %v680 = vmul.f32 %v669, %v679
      %v681 = vmul.f32 %v678, %v679
      %v682 = vxor.u32 %v680, 2147483648
      %v683 = vxor.u32 %v681, 2147483648
      %v684 = vmul.f32 %v682, 1.442695
      %v685 = vpow.pop %v684
      %v686 = vmul.f32 %v683, 1.442695
      %v687 = vpow.pop %v686
      %v688 = vadd.f32 %v685, 1.0
      %v689 = vadd.f32 %v687, 1.0
      %v690 = vrcp.pop %v688
      %v691 = vmul.f32 1.0, %v690
      %v692 = vrcp.pop %v689
      %v693 = vmul.f32 1.0, %v692
      %v696 = vcombine.low %v691, %v693
      %v698 = vunpack.c.l.s4 1966171168
      %v699 = vunpack.c.0.s8 %v698
      %v700 = vlaneseq
      %v701 = vshrl.u32 %v700, 7
      %v702 = vsub.s32 %v699, %v701
      %v703 = vrot.slane %v696, %v702
      %v705 = vunpack.c.l.s4 1966171168
      %v706 = vunpack.c.0.s8 %v705
      %v707 = vlaneseq
      %v708 = vshrl.u32 %v707, 7
      %v709 = vsub.s32 %v706, %v708
      %v710 = vrot.slane %v703, %v709
      %v712 = vlaneseq
      %vm713 = vcmp.ge.s32.totalorder %v712, 0
      %vm714 = vcmp.lt.s32.totalorder %v712, 256
      %vm715 = vmand %vm713, %vm714
      %716 = vst.msk [vmem:[%s407] ss:$2 sm:$0x3] %vm715, %v710
      %v717 = vadd.f32 %v653, %v655
      %v718 = vadd.f32 %v717, %v657
      %v719 = vadd.f32 %v718, %v659
      %v720 = vrot.slane %v719, 4
      %v721 = vadd.f32 %v719, %v720
      %v722 = vrot.slane %v721, 2
      %v723 = vadd.f32 %v721, %v722
      %v724 = vrot.slane %v723, 1
      %v725 = vadd.f32 %v723, %v724
      %v726 = vadd.f32 %v654, %v656
      %v727 = vadd.f32 %v726, %v658
      %v728 = vadd.f32 %v727, %v660
      %v729 = vrot.slane %v728, 4
      %v730 = vadd.f32 %v728, %v729
      %v731 = vrot.slane %v730, 2
      %v732 = vadd.f32 %v730, %v731
      %v733 = vrot.slane %v732, 1
      %v734 = vadd.f32 %v732, %v733
      %v735 = vmul.f32 %v725, %v679
      %v736 = vmul.f32 %v734, %v679
      %v737 = vxor.u32 %v735, 2147483648
      %v738 = vxor.u32 %v736, 2147483648
      %v739 = vmul.f32 %v737, 1.442695
      %v740 = vpow.pop %v739
      %v741 = vmul.f32 %v738, 1.442695
      %v742 = vpow.pop %v741
      %v743 = vadd.f32 %v740, 1.0
      %v744 = vadd.f32 %v742, 1.0
      %v745 = vrcp.pop %v743
      %v746 = vmul.f32 1.0, %v745
      %v747 = vrcp.pop %v744
      %v748 = vmul.f32 1.0, %v747
      %v751 = vcombine.low %v746, %v748
      %v753 = vunpack.c.l.s4 1966171168
      %v754 = vunpack.c.0.s8 %v753
      %v755 = vlaneseq
      %v756 = vshrl.u32 %v755, 7
      %v757 = vsub.s32 %v754, %v756
      %v758 = vrot.slane %v751, %v757
      %v760 = vunpack.c.l.s4 1966171168
      %v761 = vunpack.c.0.s8 %v760
      %v762 = vlaneseq
      %v763 = vshrl.u32 %v762, 7
      %v764 = vsub.s32 %v761, %v763
      %v765 = vrot.slane %v758, %v764
      %s767 = scalar_lea.vmem %s407, 1
      %768 = vst.msk [vmem:[%s767] ss:$2 sm:$0x3] %vm715, %v765
      %v769 = vld [vmem:[%s3] sm:$0xf]
      %v770 = vld [vmem:[%s3 + $0x4] sm:$0xf]
      %v771 = vld [vmem:[%s3 + $0x8] sm:$0xf]
      %v772 = vld [vmem:[%s3 + $0xc] sm:$0xf]
      %v773 = vld [vmem:[%s3 + $0x10] sm:$0xf]
      %v774 = vld [vmem:[%s3 + $0x14] sm:$0xf]
      %v775 = vld [vmem:[%s3 + $0x18] sm:$0xf]
      %v776 = vld [vmem:[%s3 + $0x1c] sm:$0xf]
      %v777 = vld [vmem:[%s3 + $0x20] sm:$0xf]
      %v778 = vld [vmem:[%s3 + $0x24] sm:$0xf]
      %v779 = vld [vmem:[%s3 + $0x28] sm:$0xf]
      %v780 = vld [vmem:[%s3 + $0x2c] sm:$0xf]
      %v781 = vld [vmem:[%s3 + $0x30] sm:$0xf]
      %v782 = vld [vmem:[%s3 + $0x34] sm:$0xf]
      %v783 = vld [vmem:[%s3 + $0x38] sm:$0xf]
      %v784 = vld [vmem:[%s3 + $0x3c] sm:$0xf]
      %v785 = vld [vmem:[%s3 + $0x40] sm:$0xf]
      %v786 = vld [vmem:[%s3 + $0x44] sm:$0xf]
      %v787 = vld [vmem:[%s3 + $0x48] sm:$0xf]
      %v788 = vld [vmem:[%s3 + $0x4c] sm:$0xf]
      %v789 = vld [vmem:[%s3 + $0x50] sm:$0xf]
      %v790 = vld [vmem:[%s3 + $0x54] sm:$0xf]
      %v791 = vld [vmem:[%s3 + $0x58] sm:$0xf]
      %v792 = vld [vmem:[%s3 + $0x5c] sm:$0xf]
      %v793 = vld [vmem:[%s3 + $0x60] sm:$0xf]
      %v794 = vld [vmem:[%s3 + $0x64] sm:$0xf]
      %v795 = vld [vmem:[%s3 + $0x68] sm:$0xf]
      %v796 = vld [vmem:[%s3 + $0x6c] sm:$0xf]
      %v797 = vld [vmem:[%s3 + $0x70] sm:$0xf]
      %v798 = vld [vmem:[%s3 + $0x74] sm:$0xf]
      %v799 = vld [vmem:[%s3 + $0x78] sm:$0xf]
      %v800 = vld [vmem:[%s3 + $0x7c] sm:$0xf]
      %v801 = vld [vmem:[%s4] sm:$0xff]
      %v802 = vld [vmem:[%s4 + $0x8] sm:$0xff]
      %v803 = vld [vmem:[%s4 + $0x10] sm:$0xff]
      %v804 = vld [vmem:[%s4 + $0x18] sm:$0xff]
      %v805 = vld [vmem:[%s4 + $0x20] sm:$0xff]
      %v806 = vld [vmem:[%s4 + $0x28] sm:$0xff]
      %v807 = vld [vmem:[%s4 + $0x30] sm:$0xff]
      %v808 = vld [vmem:[%s4 + $0x38] sm:$0xff]
      %v809 = vld [vmem:[%s4 + $0x40] sm:$0xff]
      %v810 = vld [vmem:[%s4 + $0x48] sm:$0xff]
      %v811 = vld [vmem:[%s4 + $0x50] sm:$0xff]
      %v812 = vld [vmem:[%s4 + $0x58] sm:$0xff]
      %v813 = vld [vmem:[%s4 + $0x60] sm:$0xff]
      %v814 = vld [vmem:[%s4 + $0x68] sm:$0xff]
      %v815 = vld [vmem:[%s4 + $0x70] sm:$0xff]
      %v816 = vld [vmem:[%s4 + $0x78] sm:$0xff]
      %v817 = vld [vmem:[%s4 + $0x80] sm:$0xff]
      %v818 = vld [vmem:[%s4 + $0x88] sm:$0xff]
      %v819 = vld [vmem:[%s4 + $0x90] sm:$0xff]
      %v820 = vld [vmem:[%s4 + $0x98] sm:$0xff]
      %v821 = vld [vmem:[%s4 + $0xa0] sm:$0xff]
      %v822 = vld [vmem:[%s4 + $0xa8] sm:$0xff]
      %v823 = vld [vmem:[%s4 + $0xb0] sm:$0xff]
      %v824 = vld [vmem:[%s4 + $0xb8] sm:$0xff]
      %v825 = vld [vmem:[%s4 + $0xc0] sm:$0xff]
      %v826 = vld [vmem:[%s4 + $0xc8] sm:$0xff]
      %v827 = vld [vmem:[%s4 + $0xd0] sm:$0xff]
      %v828 = vld [vmem:[%s4 + $0xd8] sm:$0xff]
      %v829 = vld [vmem:[%s4 + $0xe0] sm:$0xff]
      %v830 = vld [vmem:[%s4 + $0xe8] sm:$0xff]
      %v831 = vld [vmem:[%s4 + $0xf0] sm:$0xff]
      %v832 = vld [vmem:[%s4 + $0xf8] sm:$0xff]
      %v833 = vpack.c.bf16 %v575, %v573
      %v834 = vpack.c.bf16 %v576, %v574
      %v835 = vpack.c.bf16 %v579, %v577
      %v836 = vpack.c.bf16 %v580, %v578
      %838 = vset.pattern.permute.xlu0 0
      %839 = vperm.xlu0 %838, %v801
      %v840 = vpop.permute.xlu0 %839
      %843 = vset.pattern.permute.xlu0 0
      %844 = vperm.xlu0 %843, %v802
      %v845 = vpop.permute.xlu0 %844
      %848 = vset.pattern.permute.xlu0 0
      %849 = vperm.xlu0 %848, %v803
      %v850 = vpop.permute.xlu0 %849
      %853 = vset.pattern.permute.xlu0 0
      %854 = vperm.xlu0 %853, %v804
      %v855 = vpop.permute.xlu0 %854
      %858 = vset.pattern.permute.xlu0 0
      %859 = vperm.xlu0 %858, %v805
      %v860 = vpop.permute.xlu0 %859
      %863 = vset.pattern.permute.xlu0 0
      %864 = vperm.xlu0 %863, %v806
      %v865 = vpop.permute.xlu0 %864
      %868 = vset.pattern.permute.xlu0 0
      %869 = vperm.xlu0 %868, %v807
      %v870 = vpop.permute.xlu0 %869
      %873 = vset.pattern.permute.xlu0 0
      %874 = vperm.xlu0 %873, %v808
      %v875 = vpop.permute.xlu0 %874
      %878 = vset.pattern.permute.xlu0 0
      %879 = vperm.xlu0 %878, %v809
      %v880 = vpop.permute.xlu0 %879
      %883 = vset.pattern.permute.xlu0 0
      %884 = vperm.xlu0 %883, %v810
      %v885 = vpop.permute.xlu0 %884
      %888 = vset.pattern.permute.xlu0 0
      %889 = vperm.xlu0 %888, %v811
      %v890 = vpop.permute.xlu0 %889
      %893 = vset.pattern.permute.xlu0 0
      %894 = vperm.xlu0 %893, %v812
      %v895 = vpop.permute.xlu0 %894
      %898 = vset.pattern.permute.xlu0 0
      %899 = vperm.xlu0 %898, %v813
      %v900 = vpop.permute.xlu0 %899
      %903 = vset.pattern.permute.xlu0 0
      %904 = vperm.xlu0 %903, %v814
      %v905 = vpop.permute.xlu0 %904
      %908 = vset.pattern.permute.xlu0 0
      %909 = vperm.xlu0 %908, %v815
      %v910 = vpop.permute.xlu0 %909
      %913 = vset.pattern.permute.xlu0 0
      %914 = vperm.xlu0 %913, %v816
      %v915 = vpop.permute.xlu0 %914
      %918 = vset.pattern.permute.xlu0 0
      %919 = vperm.xlu0 %918, %v817
      %v920 = vpop.permute.xlu0 %919
      %923 = vset.pattern.permute.xlu0 0
      %924 = vperm.xlu0 %923, %v818
      %v925 = vpop.permute.xlu0 %924
      %928 = vset.pattern.permute.xlu0 0
      %929 = vperm.xlu0 %928, %v819
      %v930 = vpop.permute.xlu0 %929
      %933 = vset.pattern.permute.xlu0 0
      %934 = vperm.xlu0 %933, %v820
      %v935 = vpop.permute.xlu0 %934
      %938 = vset.pattern.permute.xlu0 0
      %939 = vperm.xlu0 %938, %v821
      %v940 = vpop.permute.xlu0 %939
      %943 = vset.pattern.permute.xlu0 0
      %944 = vperm.xlu0 %943, %v822
      %v945 = vpop.permute.xlu0 %944
      %948 = vset.pattern.permute.xlu0 0
      %949 = vperm.xlu0 %948, %v823
      %v950 = vpop.permute.xlu0 %949
      %953 = vset.pattern.permute.xlu0 0
      %954 = vperm.xlu0 %953, %v824
      %v955 = vpop.permute.xlu0 %954
      %958 = vset.pattern.permute.xlu0 0
      %959 = vperm.xlu0 %958, %v825
      %v960 = vpop.permute.xlu0 %959
      %963 = vset.pattern.permute.xlu0 0
      %964 = vperm.xlu0 %963, %v826
      %v965 = vpop.permute.xlu0 %964
      %968 = vset.pattern.permute.xlu0 0
      %969 = vperm.xlu0 %968, %v827
      %v970 = vpop.permute.xlu0 %969
      %973 = vset.pattern.permute.xlu0 0
      %974 = vperm.xlu0 %973, %v828
      %v975 = vpop.permute.xlu0 %974
      %978 = vset.pattern.permute.xlu0 0
      %979 = vperm.xlu0 %978, %v829
      %v980 = vpop.permute.xlu0 %979
      %983 = vset.pattern.permute.xlu0 0
      %984 = vperm.xlu0 %983, %v830
      %v985 = vpop.permute.xlu0 %984
      %988 = vset.pattern.permute.xlu0 0
      %989 = vperm.xlu0 %988, %v831
      %v990 = vpop.permute.xlu0 %989
      %993 = vset.pattern.permute.xlu0 0
      %994 = vperm.xlu0 %993, %v832
      %v995 = vpop.permute.xlu0 %994
      %v1029 = vunpack.c.l.b16 %v769
      %v1030 = vunpack.c.l.b16 %v770
      %v1031 = vunpack.c.l.b16 %v771
      %v1032 = vunpack.c.l.b16 %v772
      %v1033 = vunpack.c.l.b16 %v773
      %v1034 = vunpack.c.l.b16 %v774
      %v1035 = vunpack.c.l.b16 %v775
      %v1036 = vunpack.c.l.b16 %v776
      %v1037 = vunpack.c.l.b16 %v777
      %v1038 = vunpack.c.l.b16 %v778
      %v1039 = vunpack.c.l.b16 %v779
      %v1040 = vunpack.c.l.b16 %v780
      %v1041 = vunpack.c.l.b16 %v781
      %v1042 = vunpack.c.l.b16 %v782
      %v1043 = vunpack.c.l.b16 %v783
      %v1044 = vunpack.c.l.b16 %v784
      %v1045 = vunpack.c.l.b16 %v785
      %v1046 = vunpack.c.l.b16 %v786
      %v1047 = vunpack.c.l.b16 %v787
      %v1048 = vunpack.c.l.b16 %v788
      %v1049 = vunpack.c.l.b16 %v789
      %v1050 = vunpack.c.l.b16 %v790
      %v1051 = vunpack.c.l.b16 %v791
      %v1052 = vunpack.c.l.b16 %v792
      %v1053 = vunpack.c.l.b16 %v793
      %v1054 = vunpack.c.l.b16 %v794
      %v1055 = vunpack.c.l.b16 %v795
      %v1056 = vunpack.c.l.b16 %v796
      %v1057 = vunpack.c.l.b16 %v797
      %v1058 = vunpack.c.l.b16 %v798
      %v1059 = vunpack.c.l.b16 %v799
      %v1060 = vunpack.c.l.b16 %v800
      %v1061 = vpack.c.b16 %v1030, %v1029
      %v1062 = vpack.c.b16 %v1032, %v1031
      %v1063 = vpack.c.b16 %v1034, %v1033
      %v1064 = vpack.c.b16 %v1036, %v1035
      %v1065 = vpack.c.b16 %v1038, %v1037
      %v1066 = vpack.c.b16 %v1040, %v1039
      %v1067 = vpack.c.b16 %v1042, %v1041
      %v1068 = vpack.c.b16 %v1044, %v1043
      %v1069 = vpack.c.b16 %v1046, %v1045
      %v1070 = vpack.c.b16 %v1048, %v1047
      %v1071 = vpack.c.b16 %v1050, %v1049
      %v1072 = vpack.c.b16 %v1052, %v1051
      %v1073 = vpack.c.b16 %v1054, %v1053
      %v1074 = vpack.c.b16 %v1056, %v1055
      %v1075 = vpack.c.b16 %v1058, %v1057
      %v1076 = vpack.c.b16 %v1060, %v1059
      %vm1077 = vcmask 261120
      %v1079 = vsel %vm1077, %v1061, 0
      %v1082 = vsel %vm1077, %v1062, 0
      %v1085 = vsel %vm1077, %v1063, 0
      %v1088 = vsel %vm1077, %v1064, 0
      %v1091 = vsel %vm1077, %v1065, 0
      %v1094 = vsel %vm1077, %v1066, 0
      %v1097 = vsel %vm1077, %v1067, 0
      %v1100 = vsel %vm1077, %v1068, 0
      %v1103 = vsel %vm1077, %v1069, 0
      %v1106 = vsel %vm1077, %v1070, 0
      %v1109 = vsel %vm1077, %v1071, 0
      %v1112 = vsel %vm1077, %v1072, 0
      %v1115 = vsel %vm1077, %v1073, 0
      %v1118 = vsel %vm1077, %v1074, 0
      %v1121 = vsel %vm1077, %v1075, 0
      %v1124 = vsel %vm1077, %v1076, 0
      %1126 = vmatprep.subr.bf16.mxu0 %v834
      %1127 = vmatpush1.bf16.msra.mxu0 %v833
      %1128 = vmatprep.subr.bf16.mxu0 %v836
      %1129 = vmatpush1.bf16.msra.mxu0 %v835
      %1130 = vmatprep.subr.bf16.mxu0 0
      %1131 = vmatpush1.bf16.msra.mxu0 0
      %1132 = vmatprep.subr.bf16.mxu0 0
      %1133 = vmatpush1.bf16.msra.mxu0 0
      %1134 = vmatprep.subr.bf16.mxu0 0
      %1135 = vmatpush1.bf16.msra.mxu0 0
      %1136 = vmatprep.subr.bf16.mxu0 0
      %1137 = vmatpush1.bf16.msra.mxu0 0
      %1138 = vmatprep.subr.bf16.mxu0 0
      %1139 = vmatpush1.bf16.msra.mxu0 0
      %1140 = vmatprep.subr.bf16.mxu0 0
      %1141 = vmatpush1.bf16.msra.mxu0 0
      %1142 = vmatprep.subr.bf16.mxu0 0
      %1143 = vmatpush1.bf16.msra.mxu0 0
      %1144 = vmatprep.subr.bf16.mxu0 0
      %1145 = vmatpush1.bf16.msra.mxu0 0
      %1146 = vmatprep.subr.bf16.mxu0 0
      %1147 = vmatpush1.bf16.msra.mxu0 0
      %1148 = vmatprep.subr.bf16.mxu0 0
      %1149 = vmatpush1.bf16.msra.mxu0 0
      %1150 = vmatprep.subr.bf16.mxu0 0
      %1151 = vmatpush1.bf16.msra.mxu0 0
      %1152 = vmatprep.subr.bf16.mxu0 0
      %1153 = vmatpush1.bf16.msra.mxu0 0
      %1154 = vmatprep.subr.bf16.mxu0 0
      %1155 = vmatpush1.bf16.msra.mxu0 0
      %1156 = vmatprep.subr.bf16.mxu0 0
      %1157 = vmatpush1.bf16.msra.mxu0 0
      %1158 = vmatprep.mubr.bf16.mxu0 0
      %1159 = vmatmul.mubr.bf16.gmra.mrb[0].mxu0 %v1079
      %v1160 = vpop.f32.mrb[0].mxu0
      %v1161 = vadd.f32 %v840, %v1160
      %v1162 = vpop.f32.mrb[0].mxu0
      %v1163 = vadd.f32 %v840, %v1162
      %v1164 = vpop.f32.mrb[0].mxu0
      %v1165 = vadd.f32 %v845, %v1164
      %v1166 = vpop.f32.mrb[0].mxu0
      %v1167 = vadd.f32 %v845, %v1166
      %1168 = vmatprep.mubr.bf16.mxu0 0
      %1169 = vmatmul.mubr.bf16.gmra.mrb[0].mxu0 %v1082
      %v1170 = vpop.f32.mrb[0].mxu0
      %v1171 = vadd.f32 %v850, %v1170
      %v1172 = vpop.f32.mrb[0].mxu0
      %v1173 = vadd.f32 %v850, %v1172
      %v1174 = vpop.f32.mrb[0].mxu0
      %v1175 = vadd.f32 %v855, %v1174
      %v1176 = vpop.f32.mrb[0].mxu0
      %v1177 = vadd.f32 %v855, %v1176
      %1178 = vmatprep.mubr.bf16.mxu0 0
      %1179 = vmatmul.mubr.bf16.gmra.mrb[0].mxu0 %v1085
      %v1180 = vpop.f32.mrb[0].mxu0
      %v1181 = vadd.f32 %v860, %v1180
      %v1182 = vpop.f32.mrb[0].mxu0
      %v1183 = vadd.f32 %v860, %v1182
      %v1184 = vpop.f32.mrb[0].mxu0
      %v1185 = vadd.f32 %v865, %v1184
      %v1186 = vpop.f32.mrb[0].mxu0
      %v1187 = vadd.f32 %v865, %v1186
      %1188 = vmatprep.mubr.bf16.mxu0 0
      %1189 = vmatmul.mubr.bf16.gmra.mrb[0].mxu0 %v1088
      %v1190 = vpop.f32.mrb[0].mxu0
      %v1191 = vadd.f32 %v870, %v1190
      %v1192 = vpop.f32.mrb[0].mxu0
      %v1193 = vadd.f32 %v870, %v1192
      %v1194 = vpop.f32.mrb[0].mxu0
      %v1195 = vadd.f32 %v875, %v1194
      %v1196 = vpop.f32.mrb[0].mxu0
      %v1197 = vadd.f32 %v875, %v1196
      %1198 = vmatprep.mubr.bf16.mxu0 0
      %1199 = vmatmul.mubr.bf16.gmra.mrb[0].mxu0 %v1091
      %v1200 = vpop.f32.mrb[0].mxu0
      %v1201 = vadd.f32 %v880, %v1200
      %v1202 = vpop.f32.mrb[0].mxu0
      %v1203 = vadd.f32 %v880, %v1202
      %v1204 = vpop.f32.mrb[0].mxu0
      %v1205 = vadd.f32 %v885, %v1204
      %v1206 = vpop.f32.mrb[0].mxu0
      %v1207 = vadd.f32 %v885, %v1206
      %1208 = vmatprep.mubr.bf16.mxu0 0
      %1209 = vmatmul.mubr.bf16.gmra.mrb[0].mxu0 %v1094
      %v1210 = vpop.f32.mrb[0].mxu0
      %v1211 = vadd.f32 %v890, %v1210
      %v1212 = vpop.f32.mrb[0].mxu0
      %v1213 = vadd.f32 %v890, %v1212
      %v1214 = vpop.f32.mrb[0].mxu0
      %v1215 = vadd.f32 %v895, %v1214
      %v1216 = vpop.f32.mrb[0].mxu0
      %v1217 = vadd.f32 %v895, %v1216
      %1218 = vmatprep.mubr.bf16.mxu0 0
      %1219 = vmatmul.mubr.bf16.gmra.mrb[0].mxu0 %v1097
      %v1220 = vpop.f32.mrb[0].mxu0
      %v1221 = vadd.f32 %v900, %v1220
      %v1222 = vpop.f32.mrb[0].mxu0
      %v1223 = vadd.f32 %v900, %v1222
      %v1224 = vpop.f32.mrb[0].mxu0
      %v1225 = vadd.f32 %v905, %v1224
      %v1226 = vpop.f32.mrb[0].mxu0
      %v1227 = vadd.f32 %v905, %v1226
      %1228 = vmatprep.mubr.bf16.mxu0 0
      %1229 = vmatmul.mubr.bf16.gmra.mrb[0].mxu0 %v1100
      %v1230 = vpop.f32.mrb[0].mxu0
      %v1231 = vadd.f32 %v910, %v1230
      %v1232 = vpop.f32.mrb[0].mxu0
      %v1233 = vadd.f32 %v910, %v1232
      %v1234 = vpop.f32.mrb[0].mxu0
      %v1235 = vadd.f32 %v915, %v1234
      %v1236 = vpop.f32.mrb[0].mxu0
      %v1237 = vadd.f32 %v915, %v1236
      %1238 = vmatprep.mubr.bf16.mxu0 0
      %1239 = vmatmul.mubr.bf16.gmra.mrb[0].mxu0 %v1103
      %v1240 = vpop.f32.mrb[0].mxu0
      %v1241 = vadd.f32 %v920, %v1240
      %v1242 = vpop.f32.mrb[0].mxu0
      %v1243 = vadd.f32 %v920, %v1242
      %v1244 = vpop.f32.mrb[0].mxu0
      %v1245 = vadd.f32 %v925, %v1244
      %v1246 = vpop.f32.mrb[0].mxu0
      %v1247 = vadd.f32 %v925, %v1246
      %1248 = vmatprep.mubr.bf16.mxu0 0
      %1249 = vmatmul.mubr.bf16.gmra.mrb[0].mxu0 %v1106
      %v1250 = vpop.f32.mrb[0].mxu0
      %v1251 = vadd.f32 %v930, %v1250
      %v1252 = vpop.f32.mrb[0].mxu0
      %v1253 = vadd.f32 %v930, %v1252
      %v1254 = vpop.f32.mrb[0].mxu0
      %v1255 = vadd.f32 %v935, %v1254
      %v1256 = vpop.f32.mrb[0].mxu0
      %v1257 = vadd.f32 %v935, %v1256
      %1258 = vmatprep.mubr.bf16.mxu0 0
      %1259 = vmatmul.mubr.bf16.gmra.mrb[0].mxu0 %v1109
      %v1260 = vpop.f32.mrb[0].mxu0
      %v1261 = vadd.f32 %v940, %v1260
      %v1262 = vpop.f32.mrb[0].mxu0
      %v1263 = vadd.f32 %v940, %v1262
      %v1264 = vpop.f32.mrb[0].mxu0
      %v1265 = vadd.f32 %v945, %v1264
      %v1266 = vpop.f32.mrb[0].mxu0
      %v1267 = vadd.f32 %v945, %v1266
      %1268 = vmatprep.mubr.bf16.mxu0 0
      %1269 = vmatmul.mubr.bf16.gmra.mrb[0].mxu0 %v1112
      %v1270 = vpop.f32.mrb[0].mxu0
      %v1271 = vadd.f32 %v950, %v1270
      %v1272 = vpop.f32.mrb[0].mxu0
      %v1273 = vadd.f32 %v950, %v1272
      %v1274 = vpop.f32.mrb[0].mxu0
      %v1275 = vadd.f32 %v955, %v1274
      %v1276 = vpop.f32.mrb[0].mxu0
      %v1277 = vadd.f32 %v955, %v1276
      %1278 = vmatprep.mubr.bf16.mxu0 0
      %1279 = vmatmul.mubr.bf16.gmra.mrb[0].mxu0 %v1115
      %v1280 = vpop.f32.mrb[0].mxu0
      %v1281 = vadd.f32 %v960, %v1280
      %v1282 = vpop.f32.mrb[0].mxu0
      %v1283 = vadd.f32 %v960, %v1282
      %v1284 = vpop.f32.mrb[0].mxu0
      %v1285 = vadd.f32 %v965, %v1284
      %v1286 = vpop.f32.mrb[0].mxu0
      %v1287 = vadd.f32 %v965, %v1286
      %1288 = vmatprep.mubr.bf16.mxu0 0
      %1289 = vmatmul.mubr.bf16.gmra.mrb[0].mxu0 %v1118
      %v1290 = vpop.f32.mrb[0].mxu0
      %v1291 = vadd.f32 %v970, %v1290
      %v1292 = vpop.f32.mrb[0].mxu0
      %v1293 = vadd.f32 %v970, %v1292
      %v1294 = vpop.f32.mrb[0].mxu0
      %v1295 = vadd.f32 %v975, %v1294
      %v1296 = vpop.f32.mrb[0].mxu0
      %v1297 = vadd.f32 %v975, %v1296
      %1298 = vmatprep.mubr.bf16.mxu0 0
      %1299 = vmatmul.mubr.bf16.gmra.mrb[0].mxu0 %v1121
      %v1300 = vpop.f32.mrb[0].mxu0
      %v1301 = vadd.f32 %v980, %v1300
      %v1302 = vpop.f32.mrb[0].mxu0
      %v1303 = vadd.f32 %v980, %v1302
      %v1304 = vpop.f32.mrb[0].mxu0
      %v1305 = vadd.f32 %v985, %v1304
      %v1306 = vpop.f32.mrb[0].mxu0
      %v1307 = vadd.f32 %v985, %v1306
      %1308 = vmatprep.mubr.bf16.mxu0 0
      %1309 = vmatmul.mubr.bf16.gmra.mrb[0].mxu0 %v1124
      %v1310 = vpop.f32.mrb[0].mxu0
      %v1311 = vadd.f32 %v990, %v1310
      %v1312 = vpop.f32.mrb[0].mxu0
      %v1313 = vadd.f32 %v990, %v1312
      %v1314 = vpop.f32.mrb[0].mxu0
      %v1315 = vadd.f32 %v995, %v1314
      %v1316 = vpop.f32.mrb[0].mxu0
      %v1317 = vadd.f32 %v995, %v1316
      %1318 = vdwg.mxu0
      %v1319 = vmax.f32 %v1161, 0.0
      %v1320 = vmax.f32 %v1163, 0.0
      %v1321 = vmax.f32 %v1165, 0.0
      %v1322 = vmax.f32 %v1167, 0.0
      %v1323 = vmax.f32 %v1171, 0.0
      %v1324 = vmax.f32 %v1173, 0.0
      %v1325 = vmax.f32 %v1175, 0.0
      %v1326 = vmax.f32 %v1177, 0.0
      %v1327 = vmax.f32 %v1181, 0.0
      %v1328 = vmax.f32 %v1183, 0.0
      %v1329 = vmax.f32 %v1185, 0.0
      %v1330 = vmax.f32 %v1187, 0.0
      %v1331 = vmax.f32 %v1191, 0.0
      %v1332 = vmax.f32 %v1193, 0.0
      %v1333 = vmax.f32 %v1195, 0.0
      %v1334 = vmax.f32 %v1197, 0.0
      %v1335 = vmax.f32 %v1201, 0.0
      %v1336 = vmax.f32 %v1203, 0.0
      %v1337 = vmax.f32 %v1205, 0.0
      %v1338 = vmax.f32 %v1207, 0.0
      %v1339 = vmax.f32 %v1211, 0.0
      %v1340 = vmax.f32 %v1213, 0.0
      %v1341 = vmax.f32 %v1215, 0.0
      %v1342 = vmax.f32 %v1217, 0.0
      %v1343 = vmax.f32 %v1221, 0.0
      %v1344 = vmax.f32 %v1223, 0.0
      %v1345 = vmax.f32 %v1225, 0.0
      %v1346 = vmax.f32 %v1227, 0.0
      %v1347 = vmax.f32 %v1231, 0.0
      %v1348 = vmax.f32 %v1233, 0.0
      %v1349 = vmax.f32 %v1235, 0.0
      %v1350 = vmax.f32 %v1237, 0.0
      %v1351 = vmax.f32 %v1241, 0.0
      %v1352 = vmax.f32 %v1243, 0.0
      %v1353 = vmax.f32 %v1245, 0.0
      %v1354 = vmax.f32 %v1247, 0.0
      %v1355 = vmax.f32 %v1251, 0.0
      %v1356 = vmax.f32 %v1253, 0.0
      %v1357 = vmax.f32 %v1255, 0.0
      %v1358 = vmax.f32 %v1257, 0.0
      %v1359 = vmax.f32 %v1261, 0.0
      %v1360 = vmax.f32 %v1263, 0.0
      %v1361 = vmax.f32 %v1265, 0.0
      %v1362 = vmax.f32 %v1267, 0.0
      %v1363 = vmax.f32 %v1271, 0.0
      %v1364 = vmax.f32 %v1273, 0.0
      %v1365 = vmax.f32 %v1275, 0.0
      %v1366 = vmax.f32 %v1277, 0.0
      %v1367 = vmax.f32 %v1281, 0.0
      %v1368 = vmax.f32 %v1283, 0.0
      %v1369 = vmax.f32 %v1285, 0.0
      %v1370 = vmax.f32 %v1287, 0.0
      %v1371 = vmax.f32 %v1291, 0.0
      %v1372 = vmax.f32 %v1293, 0.0
      %v1373 = vmax.f32 %v1295, 0.0
      %v1374 = vmax.f32 %v1297, 0.0
      %v1375 = vmax.f32 %v1301, 0.0
      %v1376 = vmax.f32 %v1303, 0.0
      %v1377 = vmax.f32 %v1305, 0.0
      %v1378 = vmax.f32 %v1307, 0.0
      %v1379 = vmax.f32 %v1311, 0.0
      %v1380 = vmax.f32 %v1313, 0.0
      %v1381 = vmax.f32 %v1315, 0.0
      %v1382 = vmax.f32 %v1317, 0.0
      %v1383 = vpack.c.bf16 %v655, %v653
      %v1384 = vpack.c.bf16 %v656, %v654
      %v1385 = vpack.c.bf16 %v659, %v657
      %v1386 = vpack.c.bf16 %v660, %v658
      %1387 = vmatprep.subr.bf16.mxu0 %v1384
      %1388 = vmatpush1.bf16.msra.mxu0 %v1383
      %1389 = vmatprep.subr.bf16.mxu0 %v1386
      %1390 = vmatpush1.bf16.msra.mxu0 %v1385
      %1391 = vmatprep.subr.bf16.mxu0 0
      %1392 = vmatpush1.bf16.msra.mxu0 0
      %1393 = vmatprep.subr.bf16.mxu0 0
      %1394 = vmatpush1.bf16.msra.mxu0 0
      %1395 = vmatprep.subr.bf16.mxu0 0
      %1396 = vmatpush1.bf16.msra.mxu0 0
      %1397 = vmatprep.subr.bf16.mxu0 0
      %1398 = vmatpush1.bf16.msra.mxu0 0
      %1399 = vmatprep.subr.bf16.mxu0 0
      %1400 = vmatpush1.bf16.msra.mxu0 0
      %1401 = vmatprep.subr.bf16.mxu0 0
      %1402 = vmatpush1.bf16.msra.mxu0 0
      %1403 = vmatprep.subr.bf16.mxu0 0
      %1404 = vmatpush1.bf16.msra.mxu0 0
      %1405 = vmatprep.subr.bf16.mxu0 0
      %1406 = vmatpush1.bf16.msra.mxu0 0
      %1407 = vmatprep.subr.bf16.mxu0 0
      %1408 = vmatpush1.bf16.msra.mxu0 0
      %1409 = vmatprep.subr.bf16.mxu0 0
      %1410 = vmatpush1.bf16.msra.mxu0 0
      %1411 = vmatprep.subr.bf16.mxu0 0
      %1412 = vmatpush1.bf16.msra.mxu0 0
      %1413 = vmatprep.subr.bf16.mxu0 0
      %1414 = vmatpush1.bf16.msra.mxu0 0
      %1415 = vmatprep.subr.bf16.mxu0 0
      %1416 = vmatpush1.bf16.msra.mxu0 0
      %1417 = vmatprep.subr.bf16.mxu0 0
      %1418 = vmatpush1.bf16.msra.mxu0 0
      %1419 = vmatprep.mubr.bf16.mxu0 0
      %1420 = vmatmul.mubr.bf16.gmra.mrb[0].mxu0 %v1079
      %v1421 = vpop.f32.mrb[0].mxu0
      %v1422 = vadd.f32 %v840, %v1421
      %v1423 = vpop.f32.mrb[0].mxu0
      %v1424 = vadd.f32 %v840, %v1423
      %v1425 = vpop.f32.mrb[0].mxu0
      %v1426 = vadd.f32 %v845, %v1425
      %v1427 = vpop.f32.mrb[0].mxu0
      %v1428 = vadd.f32 %v845, %v1427
      %1429 = vmatprep.mubr.bf16.mxu0 0
      %1430 = vmatmul.mubr.bf16.gmra.mrb[0].mxu0 %v1082
      %v1431 = vpop.f32.mrb[0].mxu0
      %v1432 = vadd.f32 %v850, %v1431
      %v1433 = vpop.f32.mrb[0].mxu0
      %v1434 = vadd.f32 %v850, %v1433
      %v1435 = vpop.f32.mrb[0].mxu0
      %v1436 = vadd.f32 %v855, %v1435
      %v1437 = vpop.f32.mrb[0].mxu0
      %v1438 = vadd.f32 %v855, %v1437
      %1439 = vmatprep.mubr.bf16.mxu0 0
      %1440 = vmatmul.mubr.bf16.gmra.mrb[0].mxu0 %v1085
      %v1441 = vpop.f32.mrb[0].mxu0
      %v1442 = vadd.f32 %v860, %v1441
      %v1443 = vpop.f32.mrb[0].mxu0
      %v1444 = vadd.f32 %v860, %v1443
      %v1445 = vpop.f32.mrb[0].mxu0
      %v1446 = vadd.f32 %v865, %v1445
      %v1447 = vpop.f32.mrb[0].mxu0
      %v1448 = vadd.f32 %v865, %v1447
      %1449 = vmatprep.mubr.bf16.mxu0 0
      %1450 = vmatmul.mubr.bf16.gmra.mrb[0].mxu0 %v1088
      %v1451 = vpop.f32.mrb[0].mxu0
      %v1452 = vadd.f32 %v870, %v1451
      %v1453 = vpop.f32.mrb[0].mxu0
      %v1454 = vadd.f32 %v870, %v1453
      %v1455 = vpop.f32.mrb[0].mxu0
      %v1456 = vadd.f32 %v875, %v1455
      %v1457 = vpop.f32.mrb[0].mxu0
      %v1458 = vadd.f32 %v875, %v1457
      %1459 = vmatprep.mubr.bf16.mxu0 0
      %1460 = vmatmul.mubr.bf16.gmra.mrb[0].mxu0 %v1091
      %v1461 = vpop.f32.mrb[0].mxu0
      %v1462 = vadd.f32 %v880, %v1461
      %v1463 = vpop.f32.mrb[0].mxu0
      %v1464 = vadd.f32 %v880, %v1463
      %v1465 = vpop.f32.mrb[0].mxu0
      %v1466 = vadd.f32 %v885, %v1465
      %v1467 = vpop.f32.mrb[0].mxu0
      %v1468 = vadd.f32 %v885, %v1467
      %1469 = vmatprep.mubr.bf16.mxu0 0
      %1470 = vmatmul.mubr.bf16.gmra.mrb[0].mxu0 %v1094
      %v1471 = vpop.f32.mrb[0].mxu0
      %v1472 = vadd.f32 %v890, %v1471
      %v1473 = vpop.f32.mrb[0].mxu0
      %v1474 = vadd.f32 %v890, %v1473
      %v1475 = vpop.f32.mrb[0].mxu0
      %v1476 = vadd.f32 %v895, %v1475
      %v1477 = vpop.f32.mrb[0].mxu0
      %v1478 = vadd.f32 %v895, %v1477
      %1479 = vmatprep.mubr.bf16.mxu0 0
      %1480 = vmatmul.mubr.bf16.gmra.mrb[0].mxu0 %v1097
      %v1481 = vpop.f32.mrb[0].mxu0
      %v1482 = vadd.f32 %v900, %v1481
      %v1483 = vpop.f32.mrb[0].mxu0
      %v1484 = vadd.f32 %v900, %v1483
      %v1485 = vpop.f32.mrb[0].mxu0
      %v1486 = vadd.f32 %v905, %v1485
      %v1487 = vpop.f32.mrb[0].mxu0
      %v1488 = vadd.f32 %v905, %v1487
      %1489 = vmatprep.mubr.bf16.mxu0 0
      %1490 = vmatmul.mubr.bf16.gmra.mrb[0].mxu0 %v1100
      %v1491 = vpop.f32.mrb[0].mxu0
      %v1492 = vadd.f32 %v910, %v1491
      %v1493 = vpop.f32.mrb[0].mxu0
      %v1494 = vadd.f32 %v910, %v1493
      %v1495 = vpop.f32.mrb[0].mxu0
      %v1496 = vadd.f32 %v915, %v1495
      %v1497 = vpop.f32.mrb[0].mxu0
      %v1498 = vadd.f32 %v915, %v1497
      %1499 = vmatprep.mubr.bf16.mxu0 0
      %1500 = vmatmul.mubr.bf16.gmra.mrb[0].mxu0 %v1103
      %v1501 = vpop.f32.mrb[0].mxu0
      %v1502 = vadd.f32 %v920, %v1501
      %v1503 = vpop.f32.mrb[0].mxu0
      %v1504 = vadd.f32 %v920, %v1503
      %v1505 = vpop.f32.mrb[0].mxu0
      %v1506 = vadd.f32 %v925, %v1505
      %v1507 = vpop.f32.mrb[0].mxu0
      %v1508 = vadd.f32 %v925, %v1507
      %1509 = vmatprep.mubr.bf16.mxu0 0
      %1510 = vmatmul.mubr.bf16.gmra.mrb[0].mxu0 %v1106
      %v1511 = vpop.f32.mrb[0].mxu0
      %v1512 = vadd.f32 %v930, %v1511
      %v1513 = vpop.f32.mrb[0].mxu0
      %v1514 = vadd.f32 %v930, %v1513
      %v1515 = vpop.f32.mrb[0].mxu0
      %v1516 = vadd.f32 %v935, %v1515
      %v1517 = vpop.f32.mrb[0].mxu0
      %v1518 = vadd.f32 %v935, %v1517
      %1519 = vmatprep.mubr.bf16.mxu0 0
      %1520 = vmatmul.mubr.bf16.gmra.mrb[0].mxu0 %v1109
      %v1521 = vpop.f32.mrb[0].mxu0
      %v1522 = vadd.f32 %v940, %v1521
      %v1523 = vpop.f32.mrb[0].mxu0
      %v1524 = vadd.f32 %v940, %v1523
      %v1525 = vpop.f32.mrb[0].mxu0
      %v1526 = vadd.f32 %v945, %v1525
      %v1527 = vpop.f32.mrb[0].mxu0
      %v1528 = vadd.f32 %v945, %v1527
      %1529 = vmatprep.mubr.bf16.mxu0 0
      %1530 = vmatmul.mubr.bf16.gmra.mrb[0].mxu0 %v1112
      %v1531 = vpop.f32.mrb[0].mxu0
      %v1532 = vadd.f32 %v950, %v1531
      %v1533 = vpop.f32.mrb[0].mxu0
      %v1534 = vadd.f32 %v950, %v1533
      %v1535 = vpop.f32.mrb[0].mxu0
      %v1536 = vadd.f32 %v955, %v1535
      %v1537 = vpop.f32.mrb[0].mxu0
      %v1538 = vadd.f32 %v955, %v1537
      %1539 = vmatprep.mubr.bf16.mxu0 0
      %1540 = vmatmul.mubr.bf16.gmra.mrb[0].mxu0 %v1115
      %v1541 = vpop.f32.mrb[0].mxu0
      %v1542 = vadd.f32 %v960, %v1541
      %v1543 = vpop.f32.mrb[0].mxu0
      %v1544 = vadd.f32 %v960, %v1543
      %v1545 = vpop.f32.mrb[0].mxu0
      %v1546 = vadd.f32 %v965, %v1545
      %v1547 = vpop.f32.mrb[0].mxu0
      %v1548 = vadd.f32 %v965, %v1547
      %1549 = vmatprep.mubr.bf16.mxu0 0
      %1550 = vmatmul.mubr.bf16.gmra.mrb[0].mxu0 %v1118
      %v1551 = vpop.f32.mrb[0].mxu0
      %v1552 = vadd.f32 %v970, %v1551
      %v1553 = vpop.f32.mrb[0].mxu0
      %v1554 = vadd.f32 %v970, %v1553
      %v1555 = vpop.f32.mrb[0].mxu0
      %v1556 = vadd.f32 %v975, %v1555
      %v1557 = vpop.f32.mrb[0].mxu0
      %v1558 = vadd.f32 %v975, %v1557
      %1559 = vmatprep.mubr.bf16.mxu0 0
      %1560 = vmatmul.mubr.bf16.gmra.mrb[0].mxu0 %v1121
      %v1561 = vpop.f32.mrb[0].mxu0
      %v1562 = vadd.f32 %v980, %v1561
      %v1563 = vpop.f32.mrb[0].mxu0
      %v1564 = vadd.f32 %v980, %v1563
      %v1565 = vpop.f32.mrb[0].mxu0
      %v1566 = vadd.f32 %v985, %v1565
      %v1567 = vpop.f32.mrb[0].mxu0
      %v1568 = vadd.f32 %v985, %v1567
      %1569 = vmatprep.mubr.bf16.mxu0 0
      %1570 = vmatmul.mubr.bf16.gmra.mrb[0].mxu0 %v1124
      %v1571 = vpop.f32.mrb[0].mxu0
      %v1572 = vadd.f32 %v990, %v1571
      %v1573 = vpop.f32.mrb[0].mxu0
      %v1574 = vadd.f32 %v990, %v1573
      %v1575 = vpop.f32.mrb[0].mxu0
      %v1576 = vadd.f32 %v995, %v1575
      %v1577 = vpop.f32.mrb[0].mxu0
      %v1578 = vadd.f32 %v995, %v1577
      %1579 = vdwg.mxu0
      %v1580 = vmax.f32 %v1422, 0.0
      %v1581 = vmax.f32 %v1424, 0.0
      %v1582 = vmax.f32 %v1426, 0.0
      %v1583 = vmax.f32 %v1428, 0.0
      %v1584 = vmax.f32 %v1432, 0.0
      %v1585 = vmax.f32 %v1434, 0.0
      %v1586 = vmax.f32 %v1436, 0.0
      %v1587 = vmax.f32 %v1438, 0.0
      %v1588 = vmax.f32 %v1442, 0.0
      %v1589 = vmax.f32 %v1444, 0.0
      %v1590 = vmax.f32 %v1446, 0.0
      %v1591 = vmax.f32 %v1448, 0.0
      %v1592 = vmax.f32 %v1452, 0.0
      %v1593 = vmax.f32 %v1454, 0.0
      %v1594 = vmax.f32 %v1456, 0.0
      %v1595 = vmax.f32 %v1458, 0.0
      %v1596 = vmax.f32 %v1462, 0.0
      %v1597 = vmax.f32 %v1464, 0.0
      %v1598 = vmax.f32 %v1466, 0.0
      %v1599 = vmax.f32 %v1468, 0.0
      %v1600 = vmax.f32 %v1472, 0.0
      %v1601 = vmax.f32 %v1474, 0.0
      %v1602 = vmax.f32 %v1476, 0.0
      %v1603 = vmax.f32 %v1478, 0.0
      %v1604 = vmax.f32 %v1482, 0.0
      %v1605 = vmax.f32 %v1484, 0.0
      %v1606 = vmax.f32 %v1486, 0.0
      %v1607 = vmax.f32 %v1488, 0.0
      %v1608 = vmax.f32 %v1492, 0.0
      %v1609 = vmax.f32 %v1494, 0.0
      %v1610 = vmax.f32 %v1496, 0.0
      %v1611 = vmax.f32 %v1498, 0.0
      %v1612 = vmax.f32 %v1502, 0.0
      %v1613 = vmax.f32 %v1504, 0.0
      %v1614 = vmax.f32 %v1506, 0.0
      %v1615 = vmax.f32 %v1508, 0.0
      %v1616 = vmax.f32 %v1512, 0.0
      %v1617 = vmax.f32 %v1514, 0.0
      %v1618 = vmax.f32 %v1516, 0.0
      %v1619 = vmax.f32 %v1518, 0.0
      %v1620 = vmax.f32 %v1522, 0.0
      %v1621 = vmax.f32 %v1524, 0.0
      %v1622 = vmax.f32 %v1526, 0.0
      %v1623 = vmax.f32 %v1528, 0.0
      %v1624 = vmax.f32 %v1532, 0.0
      %v1625 = vmax.f32 %v1534, 0.0
      %v1626 = vmax.f32 %v1536, 0.0
      %v1627 = vmax.f32 %v1538, 0.0
      %v1628 = vmax.f32 %v1542, 0.0
      %v1629 = vmax.f32 %v1544, 0.0
      %v1630 = vmax.f32 %v1546, 0.0
      %v1631 = vmax.f32 %v1548, 0.0
      %v1632 = vmax.f32 %v1552, 0.0
      %v1633 = vmax.f32 %v1554, 0.0
      %v1634 = vmax.f32 %v1556, 0.0
      %v1635 = vmax.f32 %v1558, 0.0
      %v1636 = vmax.f32 %v1562, 0.0
      %v1637 = vmax.f32 %v1564, 0.0
      %v1638 = vmax.f32 %v1566, 0.0
      %v1639 = vmax.f32 %v1568, 0.0
      %v1640 = vmax.f32 %v1572, 0.0
      %v1641 = vmax.f32 %v1574, 0.0
      %v1642 = vmax.f32 %v1576, 0.0
      %v1643 = vmax.f32 %v1578, 0.0
      %v1644 = vadd.f32 %v1319, %v1580
      %v1645 = vadd.f32 %v1320, %v1581
      %v1646 = vadd.f32 %v1321, %v1582
      %v1647 = vadd.f32 %v1322, %v1583
      %v1648 = vadd.f32 %v1323, %v1584
      %v1649 = vadd.f32 %v1324, %v1585
      %v1650 = vadd.f32 %v1325, %v1586
      %v1651 = vadd.f32 %v1326, %v1587
      %v1652 = vadd.f32 %v1327, %v1588
      %v1653 = vadd.f32 %v1328, %v1589
      %v1654 = vadd.f32 %v1329, %v1590
      %v1655 = vadd.f32 %v1330, %v1591
      %v1656 = vadd.f32 %v1331, %v1592
      %v1657 = vadd.f32 %v1332, %v1593
      %v1658 = vadd.f32 %v1333, %v1594
      %v1659 = vadd.f32 %v1334, %v1595
      %v1660 = vadd.f32 %v1335, %v1596
      %v1661 = vadd.f32 %v1336, %v1597
      %v1662 = vadd.f32 %v1337, %v1598
      %v1663 = vadd.f32 %v1338, %v1599
      %v1664 = vadd.f32 %v1339, %v1600
      %v1665 = vadd.f32 %v1340, %v1601
      %v1666 = vadd.f32 %v1341, %v1602
      %v1667 = vadd.f32 %v1342, %v1603
      %v1668 = vadd.f32 %v1343, %v1604
      %v1669 = vadd.f32 %v1344, %v1605
      %v1670 = vadd.f32 %v1345, %v1606
      %v1671 = vadd.f32 %v1346, %v1607
      %v1672 = vadd.f32 %v1347, %v1608
      %v1673 = vadd.f32 %v1348, %v1609
      %v1674 = vadd.f32 %v1349, %v1610
      %v1675 = vadd.f32 %v1350, %v1611
      %v1676 = vadd.f32 %v1351, %v1612
      %v1677 = vadd.f32 %v1352, %v1613
      %v1678 = vadd.f32 %v1353, %v1614
      %v1679 = vadd.f32 %v1354, %v1615
      %v1680 = vadd.f32 %v1355, %v1616
      %v1681 = vadd.f32 %v1356, %v1617
      %v1682 = vadd.f32 %v1357, %v1618
      %v1683 = vadd.f32 %v1358, %v1619
      %v1684 = vadd.f32 %v1359, %v1620
      %v1685 = vadd.f32 %v1360, %v1621
      %v1686 = vadd.f32 %v1361, %v1622
      %v1687 = vadd.f32 %v1362, %v1623
      %v1688 = vadd.f32 %v1363, %v1624
      %v1689 = vadd.f32 %v1364, %v1625
      %v1690 = vadd.f32 %v1365, %v1626
      %v1691 = vadd.f32 %v1366, %v1627
      %v1692 = vadd.f32 %v1367, %v1628
      %v1693 = vadd.f32 %v1368, %v1629
      %v1694 = vadd.f32 %v1369, %v1630
      %v1695 = vadd.f32 %v1370, %v1631
      %v1696 = vadd.f32 %v1371, %v1632
      %v1697 = vadd.f32 %v1372, %v1633
      %v1698 = vadd.f32 %v1373, %v1634
      %v1699 = vadd.f32 %v1374, %v1635
      %v1700 = vadd.f32 %v1375, %v1636
      %v1701 = vadd.f32 %v1376, %v1637
      %v1702 = vadd.f32 %v1377, %v1638
      %v1703 = vadd.f32 %v1378, %v1639
      %v1704 = vadd.f32 %v1379, %v1640
      %v1705 = vadd.f32 %v1380, %v1641
      %v1706 = vadd.f32 %v1381, %v1642
      %v1707 = vadd.f32 %v1382, %v1643
      %v1708 = vld [vmem:[%s5] sm:$0xff]
      %v1709 = vpack.c.bf16 %v1646, %v1644
      %v1710 = vpack.c.bf16 %v1647, %v1645
      %v1711 = vpack.c.bf16 %v1650, %v1648
      %v1712 = vpack.c.bf16 %v1651, %v1649
      %v1713 = vpack.c.bf16 %v1654, %v1652
      %v1714 = vpack.c.bf16 %v1655, %v1653
      %v1715 = vpack.c.bf16 %v1658, %v1656
      %v1716 = vpack.c.bf16 %v1659, %v1657
      %v1717 = vpack.c.bf16 %v1662, %v1660
      %v1718 = vpack.c.bf16 %v1663, %v1661
      %v1719 = vpack.c.bf16 %v1666, %v1664
      %v1720 = vpack.c.bf16 %v1667, %v1665
      %v1721 = vpack.c.bf16 %v1670, %v1668
      %v1722 = vpack.c.bf16 %v1671, %v1669
      %v1723 = vpack.c.bf16 %v1674, %v1672
      %v1724 = vpack.c.bf16 %v1675, %v1673
      %v1725 = vpack.c.bf16 %v1678, %v1676
      %v1726 = vpack.c.bf16 %v1679, %v1677
      %v1727 = vpack.c.bf16 %v1682, %v1680
      %v1728 = vpack.c.bf16 %v1683, %v1681
      %v1729 = vpack.c.bf16 %v1686, %v1684
      %v1730 = vpack.c.bf16 %v1687, %v1685
      %v1731 = vpack.c.bf16 %v1690, %v1688
      %v1732 = vpack.c.bf16 %v1691, %v1689
      %v1733 = vpack.c.bf16 %v1694, %v1692
      %v1734 = vpack.c.bf16 %v1695, %v1693
      %v1735 = vpack.c.bf16 %v1698, %v1696
      %v1736 = vpack.c.bf16 %v1699, %v1697
      %v1737 = vpack.c.bf16 %v1702, %v1700
      %v1738 = vpack.c.bf16 %v1703, %v1701
      %v1739 = vpack.c.bf16 %v1706, %v1704
      %v1740 = vpack.c.bf16 %v1707, %v1705
      %v1741 = vld [vmem:[%s6] sm:$0xff]
      %1743 = vset.pattern.permute.xlu0 0
      %1744 = vperm.xlu0 %1743, %v1741
      %v1745 = vpop.permute.xlu0 %1744
      %v1748 = vunpack.c.l.b16 %v1708
      %v1749 = vunpack.c.h.b16 %v1708
      %v1750 = vpack.c.b16 %v1748, %v1748
      %v1751 = vpack.c.b16 %v1749, %v1749
      %1754 = vmatprep.subr.bf16.mxu0 %v1710
      %1755 = vmatpush1.bf16.msra.mxu0 %v1709
      %1756 = vmatprep.subr.bf16.mxu0 %v1712
      %1757 = vmatpush1.bf16.msra.mxu0 %v1711
      %1758 = vmatprep.subr.bf16.mxu0 %v1714
      %1759 = vmatpush1.bf16.msra.mxu0 %v1713
      %1760 = vmatprep.subr.bf16.mxu0 %v1716
      %1761 = vmatpush1.bf16.msra.mxu0 %v1715
      %1762 = vmatprep.subr.bf16.mxu0 %v1718
      %1763 = vmatpush1.bf16.msra.mxu0 %v1717
      %1764 = vmatprep.subr.bf16.mxu0 %v1720
      %1765 = vmatpush1.bf16.msra.mxu0 %v1719
      %1766 = vmatprep.subr.bf16.mxu0 %v1722
      %1767 = vmatpush1.bf16.msra.mxu0 %v1721
      %1768 = vmatprep.subr.bf16.mxu0 %v1724
      %1769 = vmatpush1.bf16.msra.mxu0 %v1723
      %1770 = vmatprep.subr.bf16.mxu0 %v1726
      %1771 = vmatpush1.bf16.msra.mxu0 %v1725
      %1772 = vmatprep.subr.bf16.mxu0 %v1728
      %1773 = vmatpush1.bf16.msra.mxu0 %v1727
      %1774 = vmatprep.subr.bf16.mxu0 %v1730
      %1775 = vmatpush1.bf16.msra.mxu0 %v1729
      %1776 = vmatprep.subr.bf16.mxu0 %v1732
      %1777 = vmatpush1.bf16.msra.mxu0 %v1731
      %1778 = vmatprep.subr.bf16.mxu0 %v1734
      %1779 = vmatpush1.bf16.msra.mxu0 %v1733
      %1780 = vmatprep.subr.bf16.mxu0 %v1736
      %1781 = vmatpush1.bf16.msra.mxu0 %v1735
      %1782 = vmatprep.subr.bf16.mxu0 %v1738
      %1783 = vmatpush1.bf16.msra.mxu0 %v1737
      %1784 = vmatprep.subr.bf16.mxu0 %v1740
      %1785 = vmatpush1.bf16.msra.mxu0 %v1739
      %1786 = vmatprep.mubr.bf16.mxu0 %v1751
      %1787 = vmatmul.mubr.bf16.gmra.mrb[0].mxu0 %v1750
      %v1788 = vpop.f32.mrb[0].mxu0
      %v1789 = vadd.f32 %v1745, %v1788
      %v1790 = vpop.f32.mrb[0].mxu0
      %v1791 = vadd.f32 %v1745, %v1790
      %v1792 = vpop.f32.mrb[0].mxu0
      %v1793 = vpop.f32.mrb[0].mxu0
      %1794 = vdwg.mxu0
      %1795 = vst [vmem:[%s397] sm:$0xff] %v1789
      %1796 = vst [vmem:[%s397 + $0x8] sm:$0xff] %v1791
      %v1797 = vadd.f32 %v1319, %v1320
      %1798 = vadd.xlane.f32.xlu0 %v1797
      %v1799 = vpop.xlane.xlu0 %1798
      %v1800 = vadd.f32 %v1321, %v1322
      %1801 = vadd.xlane.f32.xlu0 %v1800
      %v1802 = vpop.xlane.xlu0 %1801
      %v1803 = vadd.f32 %v1323, %v1324
      %1804 = vadd.xlane.f32.xlu0 %v1803
      %v1805 = vpop.xlane.xlu0 %1804
      %v1806 = vadd.f32 %v1325, %v1326
      %1807 = vadd.xlane.f32.xlu0 %v1806
      %v1808 = vpop.xlane.xlu0 %1807
      %v1809 = vadd.f32 %v1327, %v1328
      %1810 = vadd.xlane.f32.xlu0 %v1809
      %v1811 = vpop.xlane.xlu0 %1810
      %v1812 = vadd.f32 %v1329, %v1330
      %1813 = vadd.xlane.f32.xlu0 %v1812
      %v1814 = vpop.xlane.xlu0 %1813
      %v1815 = vadd.f32 %v1331, %v1332
      %1816 = vadd.xlane.f32.xlu0 %v1815
      %v1817 = vpop.xlane.xlu0 %1816
      %v1818 = vadd.f32 %v1333, %v1334
      %1819 = vadd.xlane.f32.xlu0 %v1818
      %v1820 = vpop.xlane.xlu0 %1819
      %v1821 = vadd.f32 %v1335, %v1336
      %1822 = vadd.xlane.f32.xlu0 %v1821
      %v1823 = vpop.xlane.xlu0 %1822
      %v1824 = vadd.f32 %v1337, %v1338
      %1825 = vadd.xlane.f32.xlu0 %v1824
      %v1826 = vpop.xlane.xlu0 %1825
      %v1827 = vadd.f32 %v1339, %v1340
      %1828 = vadd.xlane.f32.xlu0 %v1827
      %v1829 = vpop.xlane.xlu0 %1828
      %v1830 = vadd.f32 %v1341, %v1342
      %1831 = vadd.xlane.f32.xlu0 %v1830
      %v1832 = vpop.xlane.xlu0 %1831
      %v1833 = vadd.f32 %v1343, %v1344
      %1834 = vadd.xlane.f32.xlu0 %v1833
      %v1835 = vpop.xlane.xlu0 %1834
      %v1836 = vadd.f32 %v1345, %v1346
      %1837 = vadd.xlane.f32.xlu0 %v1836
      %v1838 = vpop.xlane.xlu0 %1837
      %v1839 = vadd.f32 %v1347, %v1348
      %1840 = vadd.xlane.f32.xlu0 %v1839
      %v1841 = vpop.xlane.xlu0 %1840
      %v1842 = vadd.f32 %v1349, %v1350
      %1843 = vadd.xlane.f32.xlu0 %v1842
      %v1844 = vpop.xlane.xlu0 %1843
      %v1845 = vadd.f32 %v1351, %v1352
      %1846 = vadd.xlane.f32.xlu0 %v1845
      %v1847 = vpop.xlane.xlu0 %1846
      %v1848 = vadd.f32 %v1353, %v1354
      %1849 = vadd.xlane.f32.xlu0 %v1848
      %v1850 = vpop.xlane.xlu0 %1849
      %v1851 = vadd.f32 %v1355, %v1356
      %1852 = vadd.xlane.f32.xlu0 %v1851
      %v1853 = vpop.xlane.xlu0 %1852
      %v1854 = vadd.f32 %v1357, %v1358
      %1855 = vadd.xlane.f32.xlu0 %v1854
      %v1856 = vpop.xlane.xlu0 %1855
      %v1857 = vadd.f32 %v1359, %v1360
      %1858 = vadd.xlane.f32.xlu0 %v1857
      %v1859 = vpop.xlane.xlu0 %1858
      %v1860 = vadd.f32 %v1361, %v1362
      %1861 = vadd.xlane.f32.xlu0 %v1860
      %v1862 = vpop.xlane.xlu0 %1861
      %v1863 = vadd.f32 %v1363, %v1364
      %1864 = vadd.xlane.f32.xlu0 %v1863
      %v1865 = vpop.xlane.xlu0 %1864
      %v1866 = vadd.f32 %v1365, %v1366
      %1867 = vadd.xlane.f32.xlu0 %v1866
      %v1868 = vpop.xlane.xlu0 %1867
      %v1869 = vadd.f32 %v1367, %v1368
      %1870 = vadd.xlane.f32.xlu0 %v1869
      %v1871 = vpop.xlane.xlu0 %1870
      %v1872 = vadd.f32 %v1369, %v1370
      %1873 = vadd.xlane.f32.xlu0 %v1872
      %v1874 = vpop.xlane.xlu0 %1873
      %v1875 = vadd.f32 %v1371, %v1372
      %1876 = vadd.xlane.f32.xlu0 %v1875
      %v1877 = vpop.xlane.xlu0 %1876
      %v1878 = vadd.f32 %v1373, %v1374
      %1879 = vadd.xlane.f32.xlu0 %v1878
      %v1880 = vpop.xlane.xlu0 %1879
      %v1881 = vadd.f32 %v1375, %v1376
      %1882 = vadd.xlane.f32.xlu0 %v1881
      %v1883 = vpop.xlane.xlu0 %1882
      %v1884 = vadd.f32 %v1377, %v1378
      %1885 = vadd.xlane.f32.xlu0 %v1884
      %v1886 = vpop.xlane.xlu0 %1885
      %v1887 = vadd.f32 %v1379, %v1380
      %1888 = vadd.xlane.f32.xlu0 %v1887
      %v1889 = vpop.xlane.xlu0 %1888
      %v1890 = vadd.f32 %v1381, %v1382
      %1891 = vadd.xlane.f32.xlu0 %v1890
      %v1892 = vpop.xlane.xlu0 %1891
      %1893 = vxpose.xlu0.b32.start [1/16] %v1799, 128
      %1894 = vxpose.xlu0.b32.cont [2/16] %v1802, 128
      %1895 = vxpose.xlu0.b32.cont [3/16] %v1805, 128
      %1896 = vxpose.xlu0.b32.cont [4/16] %v1808, 128
      %1897 = vxpose.xlu0.b32.cont [5/16] %v1811, 128
      %1898 = vxpose.xlu0.b32.cont [6/16] %v1814, 128
      %1899 = vxpose.xlu0.b32.cont [7/16] %v1817, 128
      %1900 = vxpose.xlu0.b32.cont [8/16] %v1820, 128
      %1901 = vxpose.xlu0.b32.cont [9/16] %v1823, 128
      %1902 = vxpose.xlu0.b32.cont [10/16] %v1826, 128
      %1903 = vxpose.xlu0.b32.cont [11/16] %v1829, 128
      %1904 = vxpose.xlu0.b32.cont [12/16] %v1832, 128
      %1905 = vxpose.xlu0.b32.cont [13/16] %v1835, 128
      %1906 = vxpose.xlu0.b32.cont [14/16] %v1838, 128
      %1907 = vxpose.xlu0.b32.cont [15/16] %v1841, 128
      %1908 = vxpose.xlu0.b32.end [16/16] %v1844, 128
      %v1909 = vpop.trf.xlu0
      %v1910 = vpop.trf.xlu0
      %v1911 = vpop.trf.xlu0
      %v1912 = vpop.trf.xlu0
      %v1913 = vpop.trf.xlu0
      %v1914 = vpop.trf.xlu0
      %v1915 = vpop.trf.xlu0
      %v1916 = vpop.trf.xlu0
      %v1917 = vpop.trf.xlu0
      %v1918 = vpop.trf.xlu0
      %v1919 = vpop.trf.xlu0
      %v1920 = vpop.trf.xlu0
      %v1921 = vpop.trf.xlu0
      %v1922 = vpop.trf.xlu0
      %v1923 = vpop.trf.xlu0
      %v1924 = vpop.trf.xlu0
      %1925 = vxpose.xlu0.b32.start [1/16] %v1847, 128
      %1926 = vxpose.xlu0.b32.cont [2/16] %v1850, 128
      %1927 = vxpose.xlu0.b32.cont [3/16] %v1853, 128
      %1928 = vxpose.xlu0.b32.cont [4/16] %v1856, 128
      %1929 = vxpose.xlu0.b32.cont [5/16] %v1859, 128
      %1930 = vxpose.xlu0.b32.cont [6/16] %v1862, 128
      %1931 = vxpose.xlu0.b32.cont [7/16] %v1865, 128
      %1932 = vxpose.xlu0.b32.cont [8/16] %v1868, 128
      %1933 = vxpose.xlu0.b32.cont [9/16] %v1871, 128
      %1934 = vxpose.xlu0.b32.cont [10/16] %v1874, 128
      %1935 = vxpose.xlu0.b32.cont [11/16] %v1877, 128
      %1936 = vxpose.xlu0.b32.cont [12/16] %v1880, 128
      %1937 = vxpose.xlu0.b32.cont [13/16] %v1883, 128
      %1938 = vxpose.xlu0.b32.cont [14/16] %v1886, 128
      %1939 = vxpose.xlu0.b32.cont [15/16] %v1889, 128
      %1940 = vxpose.xlu0.b32.end [16/16] %v1892, 128
      %v1941 = vpop.trf.xlu0
      %v1942 = vpop.trf.xlu0
      %v1943 = vpop.trf.xlu0
      %v1944 = vpop.trf.xlu0
      %v1945 = vpop.trf.xlu0
      %v1946 = vpop.trf.xlu0
      %v1947 = vpop.trf.xlu0
      %v1948 = vpop.trf.xlu0
      %v1949 = vpop.trf.xlu0
      %v1950 = vpop.trf.xlu0
      %v1951 = vpop.trf.xlu0
      %v1952 = vpop.trf.xlu0
      %v1953 = vpop.trf.xlu0
      %v1954 = vpop.trf.xlu0
      %v1955 = vpop.trf.xlu0
      %v1956 = vpop.trf.xlu0
      %v1957 = vlaneseq
      %v1958 = vshrl.u32 %v1957, 7
      %v1959 = vsub.s32 0, %v1958
      %v1960 = vrot.slane %v1909, %v1959
      %v1961 = vlaneseq
      %v1962 = vshrl.u32 %v1961, 7
      %v1963 = vsub.s32 0, %v1962
      %v1964 = vrot.slane %v1941, %v1963
      %1965 = vst [vmem:[%s417] sm:$0xff] %v1960
      %1966 = vst [vmem:[%s417 + $0x8] sm:$0xff] %v1964
      %s1967 = smul.u32 2, %s26
      %p1968 = scmp.lt.s32.totalorder %s25, 1
      %s1969 = scalar_select %p1968, %s25, 1
      %p1970 = scmp.lt.s32.totalorder %s1967, 1
      %s1971 = scalar_select %p1970, %s1967, 1
      %s1972 = smul.addr %s1969, 2
      %s1973 = sadd.s32 %s1971, %s1972
      %s1974 = smul.addr %s1973, 8
      %s1975 = scalar_lea.vmem %s7, %s1974
      %s1976 = smul.u32 2, %s26
      %p1977 = scmp.lt.s32.totalorder %s25, 1
      %s1978 = scalar_select %p1977, %s25, 1
      %p1979 = scmp.lt.s32.totalorder %s1976, 1
      %s1980 = scalar_select %p1979, %s1976, 1
      %s1981 = smul.addr %s1978, 2
      %s1982 = sadd.s32 %s1980, %s1981
      %s1983 = smul.addr %s1982, 2
      %s1984 = scalar_lea.vmem %s8, %s1983
      %p1985 = scmp.lt.s32.totalorder %s25, 1
      %s1986 = scalar_select %p1985, %s25, 1
      %p1987 = scmp.lt.s32.totalorder %s26, 0
      %s1988 = scalar_select %p1987, %s26, 0
      %s1989 = smul.addr %s1988, 2
      %s1990 = smul.addr %s1986, 2
      %s1991 = sadd.s32 %s1989, %s1990
      %s1992 = smul.addr %s1991, 8
      %s1993 = scalar_lea.vmem %s9, %s1992
      // Predicated region
      $region49: #{multimodal_mdafn_forward.1} parent=47 // pred_check
        %p1994 = pneg %p207
      $region50: #{multimodal_mdafn_forward.1} parent=47 // pred_check_branch
        %1996 = sbr.rel (%p1994) target = $region52
      $region51: #{multimodal_mdafn_forward.1} parent=47 // pred_region
        %s1997 = smul.u32 2, %s26
      $region52: #{multimodal_mdafn_forward.1} parent=47 // pred_fallthru
        _
      // Predicated region
      $region53: #{multimodal_mdafn_forward.1} parent=47 // pred_check
        %p1998 = pneg %p235
      $region54: #{multimodal_mdafn_forward.1} parent=47 // pred_check_branch
        %2000 = sbr.rel (%p1998) target = $region56
      $region55: #{multimodal_mdafn_forward.1} parent=47 // pred_region
        %s2001 = smul.u32 2, %s26
      $region56: #{multimodal_mdafn_forward.1} parent=47 // pred_fallthru
        _
      // Predicated region
      $region57: #{multimodal_mdafn_forward.1} parent=47 // pred_check
        %p2002 = pneg %p263
      $region58: #{multimodal_mdafn_forward.1} parent=47 // pred_check_branch
        %2004 = sbr.rel (%p2002) target = $region60
      $region59: #{multimodal_mdafn_forward.1} parent=47 // pred_region
        _
      $region60: #{multimodal_mdafn_forward.1} parent=47 // pred_fallthru
        _
    $region48: #{multimodal_mdafn_forward.1} parent=5 // pred_fallthru
      _
    %p2005 = scmp.le.s32.totalorder 2, %s16
    // Predicated region
    $region61: #{multimodal_mdafn_forward.1} parent=5 // pred_check
      %p2006 = pneg %p2005
    $region62: #{multimodal_mdafn_forward.1} parent=5 // pred_check_branch
      %2008 = sbr.rel (%p2006) target = $region64
    $region63: #{multimodal_mdafn_forward.1} parent=5 // pred_region
      %s2009 = ssub.s32 %s16, 2
      // Predicated region
      $region65: #{multimodal_mdafn_forward.1} parent=63 // pred_check
        %p2010 = pneg %p213
      $region66: #{multimodal_mdafn_forward.1} parent=63 // pred_check_branch
        %2012 = sbr.rel (%p2010) target = $region68
      $region67: #{multimodal_mdafn_forward.1} parent=63 // pred_region
        %s2013 = smul.u32 2, %s28
        %p2014 = scmp.lt.s32.totalorder %s27, 1
        %s2015 = scalar_select %p2014, %s27, 1
        %p2016 = scmp.lt.s32.totalorder %s2013, 1
        %s2017 = scalar_select %p2016, %s2013, 1
        %s2018 = smul.addr %s2015, 2
        %s2019 = sadd.s32 %s2017, %s2018
        %s2020 = smul.addr %s2019, 8
        %s2021 = scalar_lea.vmem %s7, %s2020
      $region68: #{multimodal_mdafn_forward.1} parent=63 // pred_fallthru
        _
      // Predicated region
      $region69: #{multimodal_mdafn_forward.1} parent=63 // pred_check
        %p2022 = pneg %p241
      $region70: #{multimodal_mdafn_forward.1} parent=63 // pred_check_branch
        %2024 = sbr.rel (%p2022) target = $region72
      $region71: #{multimodal_mdafn_forward.1} parent=63 // pred_region
        %s2025 = smul.u32 2, %s28
        %p2026 = scmp.lt.s32.totalorder %s27, 1
        %s2027 = scalar_select %p2026, %s27, 1
        %p2028 = scmp.lt.s32.totalorder %s2025, 1
        %s2029 = scalar_select %p2028, %s2025, 1
        %s2030 = smul.addr %s2027, 2
        %s2031 = sadd.s32 %s2029, %s2030
        %s2032 = smul.addr %s2031, 2
        %s2033 = scalar_lea.vmem %s8, %s2032
      $region72: #{multimodal_mdafn_forward.1} parent=63 // pred_fallthru
        _
      // Predicated region
      $region73: #{multimodal_mdafn_forward.1} parent=63 // pred_check
        %p2034 = pneg %p269
      $region74: #{multimodal_mdafn_forward.1} parent=63 // pred_check_branch
        %2036 = sbr.rel (%p2034) target = $region76
      $region75: #{multimodal_mdafn_forward.1} parent=63 // pred_region
        %p2037 = scmp.lt.s32.totalorder %s27, 1
        %s2038 = scalar_select %p2037, %s27, 1
        %p2039 = scmp.lt.s32.totalorder %s28, 0
        %s2040 = scalar_select %p2039, %s28, 0
        %s2041 = smul.addr %s2040, 2
        %s2042 = smul.addr %s2038, 2
        %s2043 = sadd.s32 %s2041, %s2042
        %s2044 = smul.addr %s2043, 8
        %s2045 = scalar_lea.vmem %s9, %s2044
      $region76: #{multimodal_mdafn_forward.1} parent=63 // pred_fallthru
        _
    $region64: #{multimodal_mdafn_forward.1} parent=5 // pred_fallthru
      _
  $region6: #{multimodal_mdafn_forward.1} parent=0 // loop_footer
    %s20 = sadd.s32 1, %s16
  $region7: #{multimodal_mdafn_forward.1} parent=0 // loop_footer_branch
    %15 = sbr.rel target = $region3
  $region8: #{multimodal_mdafn_forward.1} parent=0 // loop_exit
    _

</llo_original>
